<compile_context>
chip_gen: v7x
topology: tpu7x:2x2x1
jax: 0.10.0
libtpu: 0.0.40
codegen_flags: <defaults>
</compile_context>

<pallas_src>
import functools
import numpy as np
import jax
import jax.numpy as jnp
from jax import lax
from jax.experimental import pallas as pl
from jax.experimental.pallas import tpu as pltpu


def _round_up(x, m):
    return (x + m - 1) // m * m


# --------------------------------------------------------------------------------------
# Fused matmul kernel:
#   A' = [relu](A * in_scale + in_shift)      (optional, per K column, f32 math)
#   R  = A' @ W                               (bf16 or f32 MXU, f32 accumulation)
#   O  = [relu]([R * out_scale] [+ out_bias]) (each stage statically optional)
def _mm_kernel(*refs, in_affine, in_relu, out_scale, out_bias, out_relu, mxu_bf16):
    it = iter(refs)
    a_ref = next(it)
    if in_affine:
        is_ref = next(it)
        ib_ref = next(it)
    w_ref = next(it)
    if out_scale:
        os_ref = next(it)
    if out_bias:
        ob_ref = next(it)
    o_ref = next(it)

    a = a_ref[...]
    if in_affine:
        # TODO(synk): on v6e/v7x this prologue could run in bf16 (bf16 VPU) — kept f32
        #             for portability/exactness (v5e has no bf16 VPU).
        a = a.astype(jnp.float32) * is_ref[...] + ib_ref[...]
        if in_relu:
            a = jnp.maximum(a, 0.0)
    if mxu_bf16:
        a = a.astype(jnp.bfloat16)
    r = jnp.dot(a, w_ref[...], preferred_element_type=jnp.float32)
    if out_scale:
        r = r * os_ref[...]
    if out_bias:
        r = r + ob_ref[...]
    if out_relu:
        r = jnp.maximum(r, 0.0)
    o_ref[...] = r.astype(o_ref.dtype)


def _pick_tm(M, K):
    # Adaptive tile height: big tiles for small-K calls (final 1x1, late deconvs,
    # resize) so the grid does not degenerate into hundreds of tiny steps; 256 for
    # K ~ 1920 keeps the double-buffered working set well under v7x's scoped VMEM.
    if K <= 160:
        t = 1024
    elif K <= 512:
        t = 512
    else:
        t = 256
    if M < t:
        t = max(16, _round_up(M, 16))      # >=16 rows for bf16 sublane packing
    return t


@functools.partial(jax.jit, static_argnames=("in_affine", "in_relu", "out_relu",
                                              "out_dtype", "n_out", "mxu_bf16"))
def fused_matmul(a, w, in_s=None, in_b=None, out_s=None, out_b=None, *,
                 in_affine=False, in_relu=False, out_relu=False,
                 out_dtype=jnp.bfloat16, n_out=None, mxu_bf16=True):
    """a: (M, K); w: (K, Np) with Np a multiple of 128 (pre-padded at init)."""
    M, K = a.shape
    Kw, Np = w.shape
    assert Kw == K and Np % 128 == 0
    n_out = Np if n_out is None else n_out
    tn = 256 if Np % 256 == 0 else 128
    tm = _pick_tm(M, K)
    Mp = _round_up(M, tm)

    if mxu_bf16:
        a = a.astype(jnp.bfloat16)
    if Mp != M:
        a = jnp.pad(a, ((0, Mp - M), (0, 0)))

    has_os = out_s is not None
    has_ob = out_b is not None

    operands = [a]
    in_specs = [pl.BlockSpec((tm, K), lambda i, j: (i, 0))]
    if in_affine:
        operands += [in_s.reshape(1, K).astype(jnp.float32),
                     in_b.reshape(1, K).astype(jnp.float32)]
        in_specs += [pl.BlockSpec((1, K), lambda i, j: (0, 0)),
                     pl.BlockSpec((1, K), lambda i, j: (0, 0))]
    operands.append(w)
    in_specs.append(pl.BlockSpec((K, tn), lambda i, j: (0, j)))
    if has_os:
        operands.append(out_s.reshape(1, Np).astype(jnp.float32))
        in_specs.append(pl.BlockSpec((1, tn), lambda i, j: (0, j)))
    if has_ob:
        operands.append(out_b.reshape(1, Np).astype(jnp.float32))
        in_specs.append(pl.BlockSpec((1, tn), lambda i, j: (0, j)))

    out = pl.pallas_call(
        functools.partial(_mm_kernel, in_affine=in_affine, in_relu=in_relu,
                          out_scale=has_os, out_bias=has_ob, out_relu=out_relu,
                          mxu_bf16=mxu_bf16),
        out_shape=jax.ShapeDtypeStruct((Mp, Np), out_dtype),
        grid_spec=pltpu.PrefetchScalarGridSpec(
            num_scalar_prefetch=0,
            grid=(Mp // tm, Np // tn),
            in_specs=in_specs,
            out_specs=pl.BlockSpec((tm, tn), lambda i, j: (i, j))),
        compiler_params=pltpu.CompilerParams(
            dimension_semantics=("parallel", "parallel")),
    )(*operands)
    if Mp != M or n_out != Np:
        out = out[:M, :n_out]
    return out


# --------------------------------------------------------------------------------------
# Plain-JAX glue.
def extract_patches(x, kh, kw, stride, pad):
    N, H, W, C = x.shape
    x_p = jnp.pad(x, ((0, 0), (pad, pad), (pad, pad), (0, 0)))
    OH = (H + 2 * pad - kh) // stride + 1
    OW = (W + 2 * pad - kw) // stride + 1
    taps = []
    for dh in range(kh):
        for dw in range(kw):
            taps.append(x_p[:, dh:dh + stride * OH:stride,
                            dw:dw + stride * OW:stride, :])
    patches = jnp.stack(taps, axis=3)                      # (N, OH, OW, kh*kw, C)
    return patches.reshape(N * OH * OW, kh * kw * C), (N, OH, OW)


def im2col3x3(y):
    """y: (N, H, W, C) -> (N*H*W, 9*C); tap order (dh, dw, cin), zero spatial padding."""
    N, H, W, C = y.shape
    yp = jnp.pad(y, ((0, 0), (1, 1), (1, 1), (0, 0)))
    taps = [yp[:, dh:dh + H, dw:dw + W, :] for dh in range(3) for dw in range(3)]
    return jnp.stack(taps, axis=3).reshape(N * H * W, 9 * C)


def maxpool3x3_s2_p1(x):
    return lax.reduce_window(x, jnp.array(-jnp.inf, x.dtype), lax.max,
                             (1, 3, 3, 1), (1, 2, 2, 1),
                             ((0, 0), (1, 1), (1, 1), (0, 0)))


def avgpool2x2(x):
    s = lax.reduce_window(x, jnp.array(0, x.dtype), lax.add,
                          (1, 2, 2, 1), (1, 2, 2, 1), 'VALID')
    return s * 0.25


def conv_transpose2x2(x, w, b4, *, in_s=None, in_b=None):
    """ConvTranspose2d(k=2,s=2) + ReLU.  w: (Cin, 4*Cout), columns ordered (p, q, cout)."""
    N, H, W, Cin = x.shape
    Cout = w.shape[1] // 4
    y = fused_matmul(x.reshape(-1, Cin), w, in_s, in_b, None, b4,
                     in_affine=in_s is not None, in_relu=False, out_relu=True,
                     out_dtype=jnp.bfloat16, n_out=4 * Cout)
    # (p,q,cout) column order keeps the channel lane dim last and contiguous; only W and
    # the row-phase axis swap in the pixel shuffle.
    y = y.reshape(N, H, W, 2, 2, Cout).transpose(0, 1, 3, 2, 4, 5)
    # TODO(synk): emit the (N,2H,2W,Cout) layout straight from the matmul epilogue with a
    #             custom out index_map to remove this XLA transpose entirely.
    return y.reshape(N, 2 * H, 2 * W, Cout)


def bilinear_matrix(in_size, out_size):
    # PyTorch bilinear, align_corners=False (half-pixel centers, clamp at edges)
    o = np.arange(out_size, dtype=np.float64)
    src = (o + 0.5) * (in_size / out_size) - 0.5
    src = np.maximum(src, 0.0)
    i0 = np.minimum(np.floor(src).astype(np.int64), in_size - 1)
    lam = src - i0
    i1 = np.minimum(i0 + 1, in_size - 1)
    R = np.zeros((out_size, in_size), np.float32)
    R[np.arange(out_size), i0] += (1.0 - lam).astype(np.float32)
    R[np.arange(out_size), i1] += lam.astype(np.float32)
    return R


@functools.lru_cache(maxsize=None)
def _resize_weight(in_size, out_size):
    R = bilinear_matrix(in_size, out_size).T               # (in, out), f32
    pad = _round_up(out_size, 128) - out_size
    return jnp.asarray(np.pad(R, ((0, 0), (0, pad))), dtype=jnp.float32)


def bilinear_resize_to_nchw(x, out_h, out_w):
    """x: (N, H, W, C) f32 -> (N, C, out_h, out_w) f32 via two f32 Pallas matmuls."""
    N, H, W, C = x.shape
    Bh = _resize_weight(H, out_h)
    Bw = _resize_weight(W, out_w)
    t = jnp.transpose(x, (0, 3, 2, 1)).reshape(N * C * W, H).astype(jnp.float32)
    t = fused_matmul(t, Bh, out_dtype=jnp.float32, n_out=out_h, mxu_bf16=False)
    t = t.reshape(N, C, W, out_h).transpose(0, 1, 3, 2).reshape(N * C * out_h, W)
    t = fused_matmul(t, Bw, out_dtype=jnp.float32, n_out=out_w, mxu_bf16=False)
    return t.reshape(N, C, out_h, out_w)


# --------------------------------------------------------------------------------------
# Dense layer: BN->ReLU->conv1x1->BN->ReLU->conv3x3, writing the GROWTH new channels
# in place into the donated, pre-allocated block feature buffer.
BLOCK_CFG = (6, 12, 48, 32)          # densenet201
GROWTH = 32
BN_SIZE = 4
NUM_INIT = 64


@functools.partial(jax.jit, donate_argnums=(0,))
def dense_layer(feat, c_off, w1, s1, b1, s2, b2, w2):
    N, H, W, CF = feat.shape
    # conv1 reads the full (zero-padded) buffer: channels >= current C are zeros and
    # their scale/shift/weight rows are zero, so the result is exact while every layer
    # of a block shares one kernel shape (K = CF).
    y1 = fused_matmul(feat.reshape(-1, CF), w1, s1, b1, s2, b2,
                      in_affine=True, in_relu=True, out_relu=True,
                      out_dtype=jnp.bfloat16, n_out=BN_SIZE * GROWTH)
    y1 = y1.reshape(N, H, W, BN_SIZE * GROWTH)
    y2 = fused_matmul(im2col3x3(y1), w2, out_relu=False,
                      out_dtype=jnp.bfloat16, n_out=GROWTH)
    y2 = y2.reshape(N, H, W, GROWTH)
    return lax.dynamic_update_slice_in_dim(feat, y2, c_off, axis=3)


# --------------------------------------------------------------------------------------
# Parameters (deterministic synthetic; densenet201 = blocks (6,12,48,32), growth 32).
def init_params(key, num_classes):
    cnt = [0]

    def nk():
        cnt[0] += 1
        return jax.random.fold_in(key, cnt[0])

    def conv_w(fan_in, cout, pad_rows_to=None, pad_cols_to=None):
        w = (jax.random.normal(nk(), (fan_in, cout), jnp.float32)
             * np.sqrt(2.0 / fan_in))
        rows = fan_in if pad_rows_to is None else pad_rows_to
        cols = _round_up(cout, 128) if pad_cols_to is None else pad_cols_to
        w = jnp.pad(w, ((0, rows - fan_in), (0, cols - cout)))
        return w.astype(jnp.bfloat16)                      # pre-padded + pre-cast once

    def bn(c, pad_to=None):
        gamma = 1.0 + 0.1 * jax.random.normal(nk(), (c,), jnp.float32)
        beta = 0.1 * jax.random.normal(nk(), (c,), jnp.float32)
        mean = 0.1 * jax.random.normal(nk(), (c,), jnp.float32)
        var = 1.0 + 0.1 * jax.random.uniform(nk(), (c,), jnp.float32)
        scale = gamma / jnp.sqrt(var + 1e-5)
        shift = beta - mean * scale
        if pad_to is not None and pad_to != c:
            scale = jnp.pad(scale, ((0, pad_to - c),))
            shift = jnp.pad(shift, ((0, pad_to - c),))
        return scale.reshape(1, -1), shift.reshape(1, -1)

    p = {'conv0_w': conv_w(7 * 7 * 3, NUM_INIT)}
    p['norm0_s'], p['norm0_b'] = bn(NUM_INIT, pad_to=128)   # folded into conv0 epilogue

    blocks, trans = [], []
    c = NUM_INIT
    for bi, n_layers in enumerate(BLOCK_CFG):
        c_final = c + GROWTH * n_layers
        layers = []
        for _ in range(n_layers):
            s1, b1 = bn(c, pad_to=c_final)                  # norm1, zero-padded to CF
            w1 = conv_w(c, BN_SIZE * GROWTH, pad_rows_to=c_final)
            s2, b2 = bn(BN_SIZE * GROWTH)                   # norm2 -> conv1 epilogue
            w2 = (jax.random.normal(nk(), (9 * BN_SIZE * GROWTH, GROWTH), jnp.float32)
                  * np.sqrt(2.0 / (9 * BN_SIZE * GROWTH)))
            w2 = jnp.pad(w2, ((0, 0), (0, 128 - GROWTH))).astype(jnp.bfloat16)
            layers.append(dict(in_s=s1, in_b=b1, w1=w1, mid_s=s2, mid_b=b2, w2=w2))
            c += GROWTH
        blocks.append(dict(layers=layers, c_final=c_final))
        if bi < len(BLOCK_CFG) - 1:
            st, bt = bn(c)
            trans.append(dict(in_s=st, in_b=bt, w=conv_w(c, c // 2)))
            c //= 2
    p['blocks'], p['trans'] = blocks, trans
    p['norm5_s'], p['norm5_b'] = bn(c)                      # c == 1920; folded into deconv0

    dec_chs = [(1920, 1024), (1024, 512), (512, 256), (256, 128), (128, 64), (64, 32)]
    deconvs = []
    for cin, cout in dec_chs:
        w = (jax.random.normal(nk(), (cin, 4 * cout), jnp.float32)
             * np.sqrt(1.0 / cin)).astype(jnp.bfloat16)     # columns ordered (p, q, cout)
        b = 0.01 * jax.random.normal(nk(), (cout,), jnp.float32)
        deconvs.append(dict(w=w, b4=jnp.tile(b, 4).reshape(1, -1)))
    p['deconv'] = deconvs

    w = jax.random.normal(nk(), (32, num_classes), jnp.float32) * np.sqrt(1.0 / 32)
    ncp = _round_up(num_classes, 128)
    p['final_w'] = jnp.pad(w, ((0, 0), (0, ncp - num_classes))).astype(jnp.bfloat16)
    b = 0.01 * jax.random.normal(nk(), (num_classes,), jnp.float32)
    p['final_b'] = jnp.pad(b, ((0, ncp - num_classes),)).reshape(1, -1)
    return p


# --------------------------------------------------------------------------------------
def forward(x_nchw, p, num_classes):
    x = jnp.transpose(x_nchw, (0, 2, 3, 1)).astype(jnp.bfloat16)     # NCHW -> NHWC, bf16
    N = x.shape[0]

    # ---- encoder: densenet201.features (eval-mode BN folded into the matmul kernels) ----
    # TODO(synk): pretrained torchvision densenet201 weights cannot be loaded here;
    #             deterministic synthetic weights with the same shapes are used instead.
    patches, (_, OH, OW) = extract_patches(x, 7, 7, 2, 3)
    y = fused_matmul(patches, p['conv0_w'], None, None, p['norm0_s'], p['norm0_b'],
                     out_relu=True, out_dtype=jnp.bfloat16, n_out=NUM_INIT)
    x = maxpool3x3_s2_p1(y.reshape(N, OH, OW, NUM_INIT))

    for bi, n_layers in enumerate(BLOCK_CFG):
        blk = p['blocks'][bi]
        Nb, H, W, C = x.shape
        c_final = blk['c_final']
        feat = jnp.pad(x, ((0, 0), (0, 0), (0, 0), (0, c_final - C)))  # preallocated buffer
        c = C
        for lp in blk['layers']:
            feat = dense_layer(feat, c, lp['w1'], lp['in_s'], lp['in_b'],
                               lp['mid_s'], lp['mid_b'], lp['w2'])
            c += GROWTH
        x = feat
        if bi < len(BLOCK_CFG) - 1:
            tp = p['trans'][bi]
            Nb, H, W, C = x.shape
            y = fused_matmul(x.reshape(-1, C), tp['w'], tp['in_s'], tp['in_b'],
                             in_affine=True, in_relu=True, out_relu=False,
                             out_dtype=jnp.bfloat16, n_out=C // 2)
            x = avgpool2x2(y.reshape(Nb, H, W, C // 2))

    # ---- decoder: 6x (ConvTranspose2d k2 s2 + ReLU) + Conv2d 1x1 ----
    # norm5 (encoder tail, no ReLU) is folded into the first deconv's A-prologue.
    for idx, d in enumerate(p['deconv']):
        if idx == 0:
            x = conv_transpose2x2(x, d['w'], d['b4'],
                                  in_s=p['norm5_s'], in_b=p['norm5_b'])
        else:
            x = conv_transpose2x2(x, d['w'], d['b4'])

    Nb, H, W, C = x.shape
    y = fused_matmul(x.reshape(-1, C), p['final_w'], None, None, None, p['final_b'],
                     out_relu=False, out_dtype=jnp.float32, n_out=num_classes)
    x = y.reshape(Nb, H, W, num_classes)

    # ---- F.interpolate(size=(600, 800), mode='bilinear', align_corners=False), f32 ----
    return bilinear_resize_to_nchw(x, 600, 800)             # NCHW output


# --------------------------------------------------------------------------------------
if __name__ == "__main__":
    key = jax.random.PRNGKey(0)
    num_classes = 3
    params = init_params(jax.random.fold_in(key, 1), num_classes)
    # small input consistent with the module: NCHW, 3 channels, spatial divisible by 32
    x = jax.random.normal(jax.random.fold_in(key, 2), (2, 3, 64, 64), jnp.float32)
    out = forward(x, params, num_classes)
    out = jax.block_until_ready(out)
    assert out.shape == (2, num_classes, 600, 800), out.shape
    assert bool(jnp.all(jnp.isfinite(out)))
    print("KERNEL_OK")
</pallas_src>

<mosaic_0001>
module attributes {stable_mosaic.version = 11 : i64} {
  func.func @_mm_kernel(%arg0: i32, %arg1: i32, %arg2: memref<1024x147xbf16, #tpu.memory_space<vmem>>, %arg3: memref<147x128xbf16, #tpu.memory_space<vmem>>, %arg4: memref<1x128xf32, #tpu.memory_space<vmem>>, %arg5: memref<1x128xf32, #tpu.memory_space<vmem>>, %arg6: memref<1024x128xbf16, #tpu.memory_space<vmem>>) attributes {dimension_semantics = [#tpu.dimension_semantics<parallel>, #tpu.dimension_semantics<parallel>], iteration_bounds = array<i64: 2, 1>, scalar_prefetch = 0 : i64, scratch_operands = 0 : i64, tpu.core_type = #tpu.core_type<tc>, window_params = [{transform_indices = @transform_0, window_bounds = array<i64: 1024, 147>}, {transform_indices = @transform_1, window_bounds = array<i64: 147, 128>}, {transform_indices = @transform_2, window_bounds = array<i64: 1, 128>}, {transform_indices = @transform_3, window_bounds = array<i64: 1, 128>}, {transform_indices = @transform_4, window_bounds = array<i64: 1024, 128>}]} {
    %c0 = arith.constant 0 : index
    %c0_0 = arith.constant 0 : index
    %0 = vector.load %arg2[%c0, %c0_0] : memref<1024x147xbf16, #tpu.memory_space<vmem>>, vector<1024x147xbf16>
    %c0_1 = arith.constant 0 : index
    %c0_2 = arith.constant 0 : index
    %1 = vector.load %arg3[%c0_1, %c0_2] : memref<147x128xbf16, #tpu.memory_space<vmem>>, vector<147x128xbf16>
    %cst = arith.constant dense<0.000000e+00> : vector<1024x128xf32>
    %2 = tpu.matmul %0, %1, %cst {dimension_numbers = #tpu.dot_dimension_numbers<[1], [0], [0], [1], [0, 0, 1, 1], [], []>} : vector<1024x147xbf16>, vector<147x128xbf16>, vector<1024x128xf32> -> vector<1024x128xf32>
    %c0_3 = arith.constant 0 : index
    %c0_4 = arith.constant 0 : index
    %3 = vector.load %arg4[%c0_3, %c0_4] : memref<1x128xf32, #tpu.memory_space<vmem>>, vector<1x128xf32>
    %4 = vector.broadcast %3 : vector<1x128xf32> to vector<1024x128xf32>
    %5 = arith.mulf %2, %4 : vector<1024x128xf32>
    %c0_5 = arith.constant 0 : index
    %c0_6 = arith.constant 0 : index
    %6 = vector.load %arg5[%c0_5, %c0_6] : memref<1x128xf32, #tpu.memory_space<vmem>>, vector<1x128xf32>
    %7 = vector.broadcast %6 : vector<1x128xf32> to vector<1024x128xf32>
    %8 = arith.addf %5, %7 : vector<1024x128xf32>
    %cst_7 = arith.constant 0.000000e+00 : f32
    %9 = vector.broadcast %cst_7 : f32 to vector<1024x128xf32>
    %10 = arith.maximumf %8, %9 : vector<1024x128xf32>
    %11 = arith.truncf %10 : vector<1024x128xf32> to vector<1024x128xbf16>
    %c0_8 = arith.constant 0 : index
    %c0_9 = arith.constant 0 : index
    %12 = vector.load %arg6[%c0_8, %c0_9] : memref<1024x128xbf16, #tpu.memory_space<vmem>>, vector<1024x128xbf16>
    tpu.vector_store %arg6[%c0_8, %c0_9], %11 {strides = array<i32>} : memref<1024x128xbf16, #tpu.memory_space<vmem>>, vector<1024x128xbf16>,
    return
  }
  func.func @transform_0(%arg0: i32, %arg1: i32) -> (i32, i32) {
    %c0_i32 = arith.constant 0 : i32
    %c0_i32_0 = arith.constant 0 : i32
    return %arg0, %c0_i32 : i32, i32
  }
  func.func @transform_1(%arg0: i32, %arg1: i32) -> (i32, i32) {
    %c0_i32 = arith.constant 0 : i32
    %c0_i32_0 = arith.constant 0 : i32
    return %c0_i32, %arg1 : i32, i32
  }
  func.func @transform_2(%arg0: i32, %arg1: i32) -> (i32, i32) {
    %c0_i32 = arith.constant 0 : i32
    %c0_i32_0 = arith.constant 0 : i32
    return %c0_i32, %arg1 : i32, i32
  }
  func.func @transform_3(%arg0: i32, %arg1: i32) -> (i32, i32) {
    %c0_i32 = arith.constant 0 : i32
    %c0_i32_0 = arith.constant 0 : i32
    return %c0_i32, %arg1 : i32, i32
  }
  func.func @transform_4(%arg0: i32, %arg1: i32) -> (i32, i32) {
    %c0_i32 = arith.constant 0 : i32
    return %arg0, %arg1 : i32, i32
  }
}

</mosaic_0001>

<llo_original>
// kernel: fused_matmul.1
$region0: #{fused_matmul.1}
  #allocation0 [shape = 'u32[]', space=smem, size = 0x4, offset = 0x4, fixed_abs, tag = 'smem constant byte address 0x4 - core index']
  #allocation1 [shape = 'u32[144,128]{1,0:T(1,128)}', space=vmem, size = 0x12000, scoped, tag = 'internal scratch']
  %s0 = inlined_call_operand.vmem [shape: bf16[2048,147], index: 0, kind: input, shape index: {}]
  %s1 = inlined_call_operand.vmem [shape: bf16[147,128], index: 1, kind: input, shape index: {}]
  %s2 = inlined_call_operand.vmem [shape: f32[1,128], index: 2, kind: input, shape index: {}]
  %s3 = inlined_call_operand.vmem [shape: f32[1,128], index: 3, kind: input, shape index: {}]
  %s4 = inlined_call_operand.vmem [shape: bf16[2048,128], index: 4, kind: output, shape index: {}]
  %s5 = sld [smem:[#allocation0]]
  $region49: #{fused_matmul.1} parent=0
    _
  %s7 = ssub.s32 1, %s5
  %s8 = scalar_select 0, %s7, %s5
  loop: start=0, step=1, limit=4
  $region2: #{fused_matmul.1} parent=0 // loop_pre_header
    _
  $region3: #{fused_matmul.1} parent=0 // loop_header
    %s10 = sphi 0, %s14
    %p11 = scmp.ge.s32.totalorder %s10, 4
    %s17 = sphi 0, %s29
    %s18 = sphi 0, %s25
    %s19 = sphi 0, %s17
    %s20 = sphi 0, %s18
    %s21 = sphi 0, %s19
    %s22 = sphi 0, %s20
    %s32 = sphi 0, %s34
    %s35 = sphi 0, %s32
    %s36 = sphi 0, %s35
    %s52 = sphi 0, %s36
    %s58 = sphi 0, %s60
    %s61 = sphi 0, %s58
    %s62 = sphi 0, %s61
    %s78 = sphi 0, %s62
    %s84 = sphi 0, %s86
    %s87 = sphi 0, %s84
    %s88 = sphi 0, %s87
    %s104 = sphi 0, %s88
    %s110 = sphi 0, %s112
    %s113 = sphi 0, %s110
    %s114 = sphi 0, %s113
    %s130 = sphi 0, %s114
    %s138 = sphi 0, %s140
    %s141 = sphi 0, %s138
    %s142 = sphi 0, %s141
    %s158 = sphi 0, %s142
  $region4: #{fused_matmul.1} parent=0 // loop_header_branch
    %13 = sbr.rel (%p11) target = $region8
  $region5: #{fused_matmul.1} parent=0 // loop_body
    %s15 = ssub.s32 %s10, 1
    %s16 = ssub.s32 %s10, 2
    %s23 = sadd.s32 1, %s18
    %p24 = scmp.ge.s32.totalorder %s23, 1
    %s25 = scalar_select %p24, 0, %s23
    %s26 = sadd.s32 1, %s17
    %s27 = scalar_select %p24, %s26, %s17
    %p28 = scmp.ge.s32.totalorder %s27, 2
    %s29 = scalar_select %p28, 0, %s27
    %s30 = ssub.s32 %s17, %s29
    %p31 = scmp.eq.s32.totalorder %s30, 0
    %s33 = sadd.s32 %s32, 1
    %s34 = scalar_select %p31, %s32, %s33
    %p37 = pneg %p31
    %p38 = scmp.eq.s32.totalorder %s10, 1
    %p39 = por %p37, %p38
    %p40 = scmp.ne.s32.totalorder %s32, %s35
    %p41 = scmp.eq.s32.totalorder %s10, 0
    %p42 = por %p40, %p41
    %p43 = scmp.ne.s32.totalorder %s32, %s35
    %p44 = scmp.eq.s32.totalorder %s15, 1
    %p45 = por %p43, %p44
    %p46 = scmp.ne.s32.totalorder %s35, %s36
    %p47 = scmp.eq.s32.totalorder %s15, 0
    %p48 = por %p46, %p47
    %p49 = scmp.ne.s32.totalorder %s35, %s36
    %p50 = scmp.eq.s32.totalorder %s16, 1
    %p51 = por %p49, %p50
    %p53 = scmp.ne.s32.totalorder %s36, %s52
    %p54 = scmp.eq.s32.totalorder %s16, 0
    %p55 = por %p53, %p54
    %s56 = ssub.s32 %s18, %s25
    %p57 = scmp.eq.s32.totalorder %s56, 0
    %s59 = sadd.s32 %s58, 1
    %s60 = scalar_select %p57, %s58, %s59
    %p63 = pneg %p57
    %p64 = scmp.eq.s32.totalorder %s10, 1
    %p65 = por %p63, %p64
    %p66 = scmp.ne.s32.totalorder %s58, %s61
    %p67 = scmp.eq.s32.totalorder %s10, 0
    %p68 = por %p66, %p67
    %p69 = scmp.ne.s32.totalorder %s58, %s61
    %p70 = scmp.eq.s32.totalorder %s15, 1
    %p71 = por %p69, %p70
    %p72 = scmp.ne.s32.totalorder %s61, %s62
    %p73 = scmp.eq.s32.totalorder %s15, 0
    %p74 = por %p72, %p73
    %p75 = scmp.ne.s32.totalorder %s61, %s62
    %p76 = scmp.eq.s32.totalorder %s16, 1
    %p77 = por %p75, %p76
    %p79 = scmp.ne.s32.totalorder %s62, %s78
    %p80 = scmp.eq.s32.totalorder %s16, 0
    %p81 = por %p79, %p80
    %s82 = ssub.s32 %s18, %s25
    %p83 = scmp.eq.s32.totalorder %s82, 0
    %s85 = sadd.s32 %s84, 1
    %s86 = scalar_select %p83, %s84, %s85
    %p89 = pneg %p83
    %p90 = scmp.eq.s32.totalorder %s10, 1
    %p91 = por %p89, %p90
    %p92 = scmp.ne.s32.totalorder %s84, %s87
    %p93 = scmp.eq.s32.totalorder %s10, 0
    %p94 = por %p92, %p93
    %p95 = scmp.ne.s32.totalorder %s84, %s87
    %p96 = scmp.eq.s32.totalorder %s15, 1
    %p97 = por %p95, %p96
    %p98 = scmp.ne.s32.totalorder %s87, %s88
    %p99 = scmp.eq.s32.totalorder %s15, 0
    %p100 = por %p98, %p99
    %p101 = scmp.ne.s32.totalorder %s87, %s88
    %p102 = scmp.eq.s32.totalorder %s16, 1
    %p103 = por %p101, %p102
    %p105 = scmp.ne.s32.totalorder %s88, %s104
    %p106 = scmp.eq.s32.totalorder %s16, 0
    %p107 = por %p105, %p106
    %s108 = ssub.s32 %s18, %s25
    %p109 = scmp.eq.s32.totalorder %s108, 0
    %s111 = sadd.s32 %s110, 1
    %s112 = scalar_select %p109, %s110, %s111
    %p115 = pneg %p109
    %p116 = scmp.eq.s32.totalorder %s10, 1
    %p117 = por %p115, %p116
    %p118 = scmp.ne.s32.totalorder %s110, %s113
    %p119 = scmp.eq.s32.totalorder %s10, 0
    %p120 = por %p118, %p119
    %p121 = scmp.ne.s32.totalorder %s110, %s113
    %p122 = scmp.eq.s32.totalorder %s15, 1
    %p123 = por %p121, %p122
    %p124 = scmp.ne.s32.totalorder %s113, %s114
    %p125 = scmp.eq.s32.totalorder %s15, 0
    %p126 = por %p124, %p125
    %p127 = scmp.ne.s32.totalorder %s113, %s114
    %p128 = scmp.eq.s32.totalorder %s16, 1
    %p129 = por %p127, %p128
    %p131 = scmp.ne.s32.totalorder %s114, %s130
    %p132 = scmp.eq.s32.totalorder %s16, 0
    %p133 = por %p131, %p132
    %s134 = ssub.s32 %s17, %s29
    %s135 = ssub.s32 %s18, %s25
    %s136 = sor.u32 %s134, %s135
    %p137 = scmp.eq.s32.totalorder %s136, 0
    %s139 = sadd.s32 %s138, 1
    %s140 = scalar_select %p137, %s138, %s139
    %p143 = pneg %p137
    %p144 = scmp.eq.s32.totalorder %s10, 1
    %p145 = por %p143, %p144
    %p146 = scmp.ne.s32.totalorder %s138, %s141
    %p147 = scmp.eq.s32.totalorder %s10, 0
    %p148 = por %p146, %p147
    %p149 = scmp.ne.s32.totalorder %s138, %s141
    %p150 = scmp.eq.s32.totalorder %s15, 1
    %p151 = por %p149, %p150
    %p152 = scmp.ne.s32.totalorder %s141, %s142
    %p153 = scmp.eq.s32.totalorder %s15, 0
    %p154 = por %p152, %p153
    %p155 = scmp.ne.s32.totalorder %s141, %s142
    %p156 = scmp.eq.s32.totalorder %s16, 1
    %p157 = por %p155, %p156
    %p159 = scmp.ne.s32.totalorder %s142, %s158
    %p160 = scmp.eq.s32.totalorder %s16, 0
    %p161 = por %p159, %p160
    %p162 = scmp.le.s32.totalorder 1, %s10
    %p163 = scmp.lt.s32.totalorder %s10, 3
    %p164 = pnand %p162, %p163
    %p165 = pneg %p164
    // Predicated region
    $region9: #{fused_matmul.1} parent=5 // pred_check
      _
    $region10: #{fused_matmul.1} parent=5 // pred_check_branch
      %167 = sbr.rel (%p164) target = $region12
    $region11: #{fused_matmul.1} parent=5 // pred_region
      %s168 = ssub.s32 %s10, 1
      // Predicated region
      $region13: #{fused_matmul.1} parent=11 // pred_check
        %p169 = pneg %p74
      $region14: #{fused_matmul.1} parent=11 // pred_check_branch
        %171 = sbr.rel (%p169) target = $region16
      $region15: #{fused_matmul.1} parent=11 // pred_region
        %p172 = scmp.lt.s32.totalorder %s20, 0
        %s173 = scalar_select %p172, %s20, 0
        %s174 = smul.addr %s173, 4
        %s175 = scalar_lea.vmem %s1, %s174
      $region16: #{fused_matmul.1} parent=11 // pred_fallthru
        _
      // Predicated region
      $region17: #{fused_matmul.1} parent=11 // pred_check
        %p176 = pneg %p100
      $region18: #{fused_matmul.1} parent=11 // pred_check_branch
        %178 = sbr.rel (%p176) target = $region20
      $region19: #{fused_matmul.1} parent=11 // pred_region
        %p179 = scmp.lt.s32.totalorder %s20, 0
        %s180 = scalar_select %p179, %s20, 0
        %s181 = scalar_lea.vmem %s2, %s180
      $region20: #{fused_matmul.1} parent=11 // pred_fallthru
        _
      // Predicated region
      $region21: #{fused_matmul.1} parent=11 // pred_check
        %p182 = pneg %p126
      $region22: #{fused_matmul.1} parent=11 // pred_check_branch
        %184 = sbr.rel (%p182) target = $region24
      $region23: #{fused_matmul.1} parent=11 // pred_region
        %p185 = scmp.lt.s32.totalorder %s20, 0
        %s186 = scalar_select %p185, %s20, 0
        %s187 = scalar_lea.vmem %s3, %s186
      $region24: #{fused_matmul.1} parent=11 // pred_fallthru
        _
    $region12: #{fused_matmul.1} parent=5 // pred_fallthru
      _
    %p188 = scmp.lt.s32.totalorder %s10, 2
    // Predicated region
    $region25: #{fused_matmul.1} parent=5 // pred_check
      %p189 = pneg %p188
    $region26: #{fused_matmul.1} parent=5 // pred_check_branch
      %191 = sbr.rel (%p189) target = $region28
    $region27: #{fused_matmul.1} parent=5 // pred_region
      // Predicated region
      $region29: #{fused_matmul.1} parent=27 // pred_check
        %p192 = pneg %p42
      $region30: #{fused_matmul.1} parent=27 // pred_check_branch
        %194 = sbr.rel (%p192) target = $region32
      $region31: #{fused_matmul.1} parent=27 // pred_region
        %s195 = smul.u32 128, %s17
        %p196 = scmp.lt.s32.totalorder %s195, 255
        %s197 = scalar_select %p196, %s195, 255
        %s198 = smul.addr %s197, 2
        %s199 = smul.addr %s198, 4
        %s200 = scalar_lea.vmem %s0, %s199
        %s201 = smul.u32 128, %s17
      $region32: #{fused_matmul.1} parent=27 // pred_fallthru
        _
    $region28: #{fused_matmul.1} parent=5 // pred_fallthru
      _
    %p202 = scmp.le.s32.totalorder 1, %s10
    %p203 = scmp.lt.s32.totalorder %s10, 3
    %p204 = pnand %p202, %p203
    %p205 = pneg %p204
    // Predicated region
    $region33: #{fused_matmul.1} parent=5 // pred_check
      _
    $region34: #{fused_matmul.1} parent=5 // pred_check_branch
      %207 = sbr.rel (%p204) target = $region36
    $region35: #{fused_matmul.1} parent=5 // pred_region
      %s208 = ssub.s32 %s10, 1
      %s209 = smul.u32 128, %s19
      %p210 = scmp.lt.s32.totalorder %s209, 255
      %s211 = scalar_select %p210, %s209, 255
      %s212 = smul.addr %s211, 2
      %s213 = smul.addr %s212, 4
      %s214 = scalar_lea.vmem %s0, %s213
      %p215 = pneg %p48
      %p216 = pneg %p45
      %p217 = scmp.lt.s32.totalorder %s20, 0
      %s218 = scalar_select %p217, %s20, 0
      %s219 = smul.addr %s218, 4
      %s220 = scalar_lea.vmem %s1, %s219
      %p221 = pneg %p74
      %p222 = pneg %p71
      %p223 = scmp.lt.s32.totalorder %s20, 0
      %s224 = scalar_select %p223, %s20, 0
      %s225 = scalar_lea.vmem %s2, %s224
      %p226 = pneg %p100
      %p227 = pneg %p97
      %p228 = scmp.lt.s32.totalorder %s20, 0
      %s229 = scalar_select %p228, %s20, 0
      %s230 = scalar_lea.vmem %s3, %s229
      %p231 = pneg %p126
      %p232 = pneg %p123
      %p233 = pneg %p154
      %p234 = pneg %p151
      %s235 = smul.u32 128, %s19
      %p236 = scmp.lt.s32.totalorder %s235, 255
      %s237 = scalar_select %p236, %s235, 255
      %p238 = scmp.lt.s32.totalorder %s20, 0
      %s239 = scalar_select %p238, %s20, 0
      %s240 = sadd.s32 %s239, %s237
      %s241 = smul.addr %s240, 4
      %s242 = scalar_lea.vmem %s4, %s241
      %s243 = smul.u32 128, %s19
      %p244 = scmp.lt.s32.totalorder %s243, 255
      %s245 = scalar_select %p244, %s243, 255
      %s246 = smul.addr %s245, 2
      %s247 = smul.addr %s246, 4
      %s248 = scalar_lea.vmem %s0, %s247
      %s249 = smul.u32 128, %s19
      %p250 = scmp.lt.s32.totalorder %s20, 0
      %s251 = scalar_select %p250, %s20, 0
      %s252 = smul.addr %s251, 4
      %s253 = scalar_lea.vmem %s1, %s252
      %p254 = scmp.lt.s32.totalorder %s20, 0
      %s255 = scalar_select %p254, %s20, 0
      %s256 = scalar_lea.vmem %s2, %s255
      %p257 = scmp.lt.s32.totalorder %s20, 0
      %s258 = scalar_select %p257, %s20, 0
      %s259 = scalar_lea.vmem %s3, %s258
      %s260 = smul.u32 128, %s19
      %p261 = scmp.lt.s32.totalorder %s260, 255
      %s262 = scalar_select %p261, %s260, 255
      %p263 = scmp.lt.s32.totalorder %s20, 0
      %s264 = scalar_select %p263, %s20, 0
      %s265 = sadd.s32 %s264, %s262
      %s266 = smul.addr %s265, 4
      %s267 = scalar_lea.vmem %s4, %s266
      %s268 = smul.u32 128, %s19
      %v270 = vld [vmem:[%s248] sm:$0xff]
      %v271 = vld [vmem:[%s248 + $0x8] sm:$0xff]
      %v272 = vld [vmem:[%s248 + $0x10] sm:$0xff]
      %v273 = vld [vmem:[%s248 + $0x18] sm:$0xff]
      %v274 = vld [vmem:[%s248 + $0x20] sm:$0xff]
      %v275 = vld [vmem:[%s248 + $0x28] sm:$0xff]
      %v276 = vld [vmem:[%s248 + $0x30] sm:$0xff]
      %v277 = vld [vmem:[%s248 + $0x38] sm:$0xff]
      %v278 = vld [vmem:[%s248 + $0x40] sm:$0xff]
      %v279 = vld [vmem:[%s248 + $0x48] sm:$0xff]
      %v280 = vld [vmem:[%s248 + $0x50] sm:$0xff]
      %v281 = vld [vmem:[%s248 + $0x58] sm:$0xff]
      %v282 = vld [vmem:[%s248 + $0x60] sm:$0xff]
      %v283 = vld [vmem:[%s248 + $0x68] sm:$0xff]
      %v284 = vld [vmem:[%s248 + $0x70] sm:$0xff]
      %v285 = vld [vmem:[%s248 + $0x78] sm:$0xff]
      %v286 = vld [vmem:[%s248 + $0x80] sm:$0xff]
      %v287 = vld [vmem:[%s248 + $0x88] sm:$0xff]
      %v288 = vld [vmem:[%s248 + $0x90] sm:$0xff]
      %v289 = vld [vmem:[%s248 + $0x98] sm:$0xff]
      %v290 = vld [vmem:[%s248 + $0xa0] sm:$0xff]
      %v291 = vld [vmem:[%s248 + $0xa8] sm:$0xff]
      %v292 = vld [vmem:[%s248 + $0xb0] sm:$0xff]
      %v293 = vld [vmem:[%s248 + $0xb8] sm:$0xff]
      %v294 = vld [vmem:[%s248 + $0xc0] sm:$0xff]
      %v295 = vld [vmem:[%s248 + $0xc8] sm:$0xff]
      %v296 = vld [vmem:[%s248 + $0xd0] sm:$0xff]
      %v297 = vld [vmem:[%s248 + $0xd8] sm:$0xff]
      %v298 = vld [vmem:[%s248 + $0xe0] sm:$0xff]
      %v299 = vld [vmem:[%s248 + $0xe8] sm:$0xff]
      %v300 = vld [vmem:[%s248 + $0xf0] sm:$0xff]
      %v301 = vld [vmem:[%s248 + $0xf8] sm:$0xff]
      %v302 = vld [vmem:[%s248 + $0x100] sm:$0xff]
      %v303 = vld [vmem:[%s248 + $0x108] sm:$0xff]
      %v304 = vld [vmem:[%s248 + $0x110] sm:$0xff]
      %v305 = vld [vmem:[%s248 + $0x118] sm:$0xff]
      %v306 = vld [vmem:[%s248 + $0x120] sm:$0xff]
      %v307 = vld [vmem:[%s248 + $0x128] sm:$0xff]
      %v308 = vld [vmem:[%s248 + $0x130] sm:$0xff]
      %v309 = vld [vmem:[%s248 + $0x138] sm:$0xff]
      %v310 = vld [vmem:[%s248 + $0x140] sm:$0xff]
      %v311 = vld [vmem:[%s248 + $0x148] sm:$0xff]
      %v312 = vld [vmem:[%s248 + $0x150] sm:$0xff]
      %v313 = vld [vmem:[%s248 + $0x158] sm:$0xff]
      %v314 = vld [vmem:[%s248 + $0x160] sm:$0xff]
      %v315 = vld [vmem:[%s248 + $0x168] sm:$0xff]
      %v316 = vld [vmem:[%s248 + $0x170] sm:$0xff]
      %v317 = vld [vmem:[%s248 + $0x178] sm:$0xff]
      %v318 = vld [vmem:[%s248 + $0x180] sm:$0xff]
      %v319 = vld [vmem:[%s248 + $0x188] sm:$0xff]
      %v320 = vld [vmem:[%s248 + $0x190] sm:$0xff]
      %v321 = vld [vmem:[%s248 + $0x198] sm:$0xff]
      %v322 = vld [vmem:[%s248 + $0x1a0] sm:$0xff]
      %v323 = vld [vmem:[%s248 + $0x1a8] sm:$0xff]
      %v324 = vld [vmem:[%s248 + $0x1b0] sm:$0xff]
      %v325 = vld [vmem:[%s248 + $0x1b8] sm:$0xff]
      %v326 = vld [vmem:[%s248 + $0x1c0] sm:$0xff]
      %v327 = vld [vmem:[%s248 + $0x1c8] sm:$0xff]
      %v328 = vld [vmem:[%s248 + $0x1d0] sm:$0xff]
      %v329 = vld [vmem:[%s248 + $0x1d8] sm:$0xff]
      %v330 = vld [vmem:[%s248 + $0x1e0] sm:$0xff]
      %v331 = vld [vmem:[%s248 + $0x1e8] sm:$0xff]
      %v332 = vld [vmem:[%s248 + $0x1f0] sm:$0xff]
      %v333 = vld [vmem:[%s248 + $0x1f8] sm:$0xff]
      %v334 = vld [vmem:[%s248 + $0x200] sm:$0xff]
      %v335 = vld [vmem:[%s248 + $0x208] sm:$0xff]
      %v336 = vld [vmem:[%s248 + $0x210] sm:$0xff]
      %v337 = vld [vmem:[%s248 + $0x218] sm:$0xff]
      %v338 = vld [vmem:[%s248 + $0x220] sm:$0xff]
      %v339 = vld [vmem:[%s248 + $0x228] sm:$0xff]
      %v340 = vld [vmem:[%s248 + $0x230] sm:$0xff]
      %v341 = vld [vmem:[%s248 + $0x238] sm:$0xff]
      %v342 = vld [vmem:[%s248 + $0x240] sm:$0xff]
      %v343 = vld [vmem:[%s248 + $0x248] sm:$0xff]
      %v344 = vld [vmem:[%s248 + $0x250] sm:$0xff]
      %v345 = vld [vmem:[%s248 + $0x258] sm:$0xff]
      %v346 = vld [vmem:[%s248 + $0x260] sm:$0xff]
      %v347 = vld [vmem:[%s248 + $0x268] sm:$0xff]
      %v348 = vld [vmem:[%s248 + $0x270] sm:$0xff]
      %v349 = vld [vmem:[%s248 + $0x278] sm:$0xff]
      %v350 = vld [vmem:[%s248 + $0x280] sm:$0xff]
      %v351 = vld [vmem:[%s248 + $0x288] sm:$0xff]
      %v352 = vld [vmem:[%s248 + $0x290] sm:$0xff]
      %v353 = vld [vmem:[%s248 + $0x298] sm:$0xff]
      %v354 = vld [vmem:[%s248 + $0x2a0] sm:$0xff]
      %v355 = vld [vmem:[%s248 + $0x2a8] sm:$0xff]
      %v356 = vld [vmem:[%s248 + $0x2b0] sm:$0xff]
      %v357 = vld [vmem:[%s248 + $0x2b8] sm:$0xff]
      %v358 = vld [vmem:[%s248 + $0x2c0] sm:$0xff]
      %v359 = vld [vmem:[%s248 + $0x2c8] sm:$0xff]
      %v360 = vld [vmem:[%s248 + $0x2d0] sm:$0xff]
      %v361 = vld [vmem:[%s248 + $0x2d8] sm:$0xff]
      %v362 = vld [vmem:[%s248 + $0x2e0] sm:$0xff]
      %v363 = vld [vmem:[%s248 + $0x2e8] sm:$0xff]
      %v364 = vld [vmem:[%s248 + $0x2f0] sm:$0xff]
      %v365 = vld [vmem:[%s248 + $0x2f8] sm:$0xff]
      %v366 = vld [vmem:[%s248 + $0x300] sm:$0xff]
      %v367 = vld [vmem:[%s248 + $0x308] sm:$0xff]
      %v368 = vld [vmem:[%s248 + $0x310] sm:$0xff]
      %v369 = vld [vmem:[%s248 + $0x318] sm:$0xff]
      %v370 = vld [vmem:[%s248 + $0x320] sm:$0xff]
      %v371 = vld [vmem:[%s248 + $0x328] sm:$0xff]
      %v372 = vld [vmem:[%s248 + $0x330] sm:$0xff]
      %v373 = vld [vmem:[%s248 + $0x338] sm:$0xff]
      %v374 = vld [vmem:[%s248 + $0x340] sm:$0xff]
      %v375 = vld [vmem:[%s248 + $0x348] sm:$0xff]
      %v376 = vld [vmem:[%s248 + $0x350] sm:$0xff]
      %v377 = vld [vmem:[%s248 + $0x358] sm:$0xff]
      %v378 = vld [vmem:[%s248 + $0x360] sm:$0xff]
      %v379 = vld [vmem:[%s248 + $0x368] sm:$0xff]
      %v380 = vld [vmem:[%s248 + $0x370] sm:$0xff]
      %v381 = vld [vmem:[%s248 + $0x378] sm:$0xff]
      %v382 = vld [vmem:[%s248 + $0x380] sm:$0xff]
      %v383 = vld [vmem:[%s248 + $0x388] sm:$0xff]
      %v384 = vld [vmem:[%s248 + $0x390] sm:$0xff]
      %v385 = vld [vmem:[%s248 + $0x398] sm:$0xff]
      %v386 = vld [vmem:[%s248 + $0x3a0] sm:$0xff]
      %v387 = vld [vmem:[%s248 + $0x3a8] sm:$0xff]
      %v388 = vld [vmem:[%s248 + $0x3b0] sm:$0xff]
      %v389 = vld [vmem:[%s248 + $0x3b8] sm:$0xff]
      %v390 = vld [vmem:[%s248 + $0x3c0] sm:$0xff]
      %v391 = vld [vmem:[%s248 + $0x3c8] sm:$0xff]
      %v392 = vld [vmem:[%s248 + $0x3d0] sm:$0xff]
      %v393 = vld [vmem:[%s248 + $0x3d8] sm:$0xff]
      %v394 = vld [vmem:[%s248 + $0x3e0] sm:$0xff]
      %v395 = vld [vmem:[%s248 + $0x3e8] sm:$0xff]
      %v396 = vld [vmem:[%s248 + $0x3f0] sm:$0xff]
      %v397 = vld [vmem:[%s248 + $0x3f8] sm:$0xff]
      %v398 = vld [vmem:[%s253] sm:$0xf]
      %v399 = vld [vmem:[%s253 + $0x4] sm:$0xf]
      %v400 = vld [vmem:[%s253 + $0x8] sm:$0xf]
      %v401 = vld [vmem:[%s253 + $0xc] sm:$0xf]
      %v402 = vld [vmem:[%s253 + $0x10] sm:$0xf]
      %v403 = vld [vmem:[%s253 + $0x14] sm:$0xf]
      %v404 = vld [vmem:[%s253 + $0x18] sm:$0xf]
      %v405 = vld [vmem:[%s253 + $0x1c] sm:$0xf]
      %v406 = vld [vmem:[%s253 + $0x20] sm:$0xf]
      %v407 = vld [vmem:[%s253 + $0x24] sm:$0xf]
      %v408 = vld [vmem:[%s253 + $0x28] sm:$0xf]
      %v409 = vld [vmem:[%s253 + $0x2c] sm:$0xf]
      %v410 = vld [vmem:[%s253 + $0x30] sm:$0xf]
      %v411 = vld [vmem:[%s253 + $0x34] sm:$0xf]
      %v412 = vld [vmem:[%s253 + $0x38] sm:$0xf]
      %v413 = vld [vmem:[%s253 + $0x3c] sm:$0xf]
      %v414 = vld [vmem:[%s253 + $0x40] sm:$0xf]
      %v415 = vld [vmem:[%s253 + $0x44] sm:$0xf]
      %v416 = vld [vmem:[%s253 + $0x48] sm:$0x3]
      %v545 = vunpack.c.l.b16 %v270
      %v546 = vunpack.c.h.b16 %v270
      %v547 = vunpack.c.l.b16 %v271
      %v548 = vunpack.c.h.b16 %v271
      %v549 = vunpack.c.l.b16 %v272
      %v550 = vunpack.c.h.b16 %v272
      %v551 = vunpack.c.l.b16 %v273
      %v552 = vunpack.c.h.b16 %v273
      %v553 = vunpack.c.l.b16 %v274
      %v554 = vunpack.c.h.b16 %v274
      %v555 = vunpack.c.l.b16 %v275
      %v556 = vunpack.c.h.b16 %v275
      %v557 = vunpack.c.l.b16 %v276
      %v558 = vunpack.c.h.b16 %v276
      %v559 = vunpack.c.l.b16 %v277
      %v560 = vunpack.c.h.b16 %v277
      %v561 = vunpack.c.l.b16 %v278
      %v562 = vunpack.c.h.b16 %v278
      %v563 = vunpack.c.l.b16 %v279
      %v564 = vunpack.c.h.b16 %v279
      %v565 = vunpack.c.l.b16 %v280
      %v566 = vunpack.c.h.b16 %v280
      %v567 = vunpack.c.l.b16 %v281
      %v568 = vunpack.c.h.b16 %v281
      %v569 = vunpack.c.l.b16 %v282
      %v570 = vunpack.c.h.b16 %v282
      %v571 = vunpack.c.l.b16 %v283
      %v572 = vunpack.c.h.b16 %v283
      %v573 = vunpack.c.l.b16 %v284
      %v574 = vunpack.c.h.b16 %v284
      %v575 = vunpack.c.l.b16 %v285
      %v576 = vunpack.c.h.b16 %v285
      %v577 = vunpack.c.l.b16 %v286
      %v578 = vunpack.c.h.b16 %v286
      %v579 = vunpack.c.l.b16 %v287
      %v580 = vunpack.c.h.b16 %v287
      %v581 = vunpack.c.l.b16 %v288
      %v582 = vunpack.c.h.b16 %v288
      %v583 = vunpack.c.l.b16 %v289
      %v584 = vunpack.c.h.b16 %v289
      %v585 = vunpack.c.l.b16 %v290
      %v586 = vunpack.c.h.b16 %v290
      %v587 = vunpack.c.l.b16 %v291
      %v588 = vunpack.c.h.b16 %v291
      %v589 = vunpack.c.l.b16 %v292
      %v590 = vunpack.c.h.b16 %v292
      %v591 = vunpack.c.l.b16 %v293
      %v592 = vunpack.c.h.b16 %v293
      %v593 = vunpack.c.l.b16 %v294
      %v594 = vunpack.c.h.b16 %v294
      %v595 = vunpack.c.l.b16 %v295
      %v596 = vunpack.c.h.b16 %v295
      %v597 = vunpack.c.l.b16 %v296
      %v598 = vunpack.c.h.b16 %v296
      %v599 = vunpack.c.l.b16 %v297
      %v600 = vunpack.c.h.b16 %v297
      %v601 = vunpack.c.l.b16 %v298
      %v602 = vunpack.c.h.b16 %v298
      %v603 = vunpack.c.l.b16 %v299
      %v604 = vunpack.c.h.b16 %v299
      %v605 = vunpack.c.l.b16 %v300
      %v606 = vunpack.c.h.b16 %v300
      %v607 = vunpack.c.l.b16 %v301
      %v608 = vunpack.c.h.b16 %v301
      %v609 = vunpack.c.l.b16 %v302
      %v610 = vunpack.c.h.b16 %v302
      %v611 = vunpack.c.l.b16 %v303
      %v612 = vunpack.c.h.b16 %v303
      %v613 = vunpack.c.l.b16 %v304
      %v614 = vunpack.c.h.b16 %v304
      %v615 = vunpack.c.l.b16 %v305
      %v616 = vunpack.c.h.b16 %v305
      %v617 = vunpack.c.l.b16 %v306
      %v618 = vunpack.c.h.b16 %v306
      %v619 = vunpack.c.l.b16 %v307
      %v620 = vunpack.c.h.b16 %v307
      %v621 = vunpack.c.l.b16 %v308
      %v622 = vunpack.c.h.b16 %v308
      %v623 = vunpack.c.l.b16 %v309
      %v624 = vunpack.c.h.b16 %v309
      %v625 = vunpack.c.l.b16 %v310
      %v626 = vunpack.c.h.b16 %v310
      %v627 = vunpack.c.l.b16 %v311
      %v628 = vunpack.c.h.b16 %v311
      %v629 = vunpack.c.l.b16 %v312
      %v630 = vunpack.c.h.b16 %v312
      %v631 = vunpack.c.l.b16 %v313
      %v632 = vunpack.c.h.b16 %v313
      %v633 = vunpack.c.l.b16 %v314
      %v634 = vunpack.c.h.b16 %v314
      %v635 = vunpack.c.l.b16 %v315
      %v636 = vunpack.c.h.b16 %v315
      %v637 = vunpack.c.l.b16 %v316
      %v638 = vunpack.c.h.b16 %v316
      %v639 = vunpack.c.l.b16 %v317
      %v640 = vunpack.c.h.b16 %v317
      %v641 = vunpack.c.l.b16 %v318
      %v642 = vunpack.c.h.b16 %v318
      %v643 = vunpack.c.l.b16 %v319
      %v644 = vunpack.c.h.b16 %v319
      %v645 = vunpack.c.l.b16 %v320
      %v646 = vunpack.c.h.b16 %v320
      %v647 = vunpack.c.l.b16 %v321
      %v648 = vunpack.c.h.b16 %v321
      %v649 = vunpack.c.l.b16 %v322
      %v650 = vunpack.c.h.b16 %v322
      %v651 = vunpack.c.l.b16 %v323
      %v652 = vunpack.c.h.b16 %v323
      %v653 = vunpack.c.l.b16 %v324
      %v654 = vunpack.c.h.b16 %v324
      %v655 = vunpack.c.l.b16 %v325
      %v656 = vunpack.c.h.b16 %v325
      %v657 = vunpack.c.l.b16 %v326
      %v658 = vunpack.c.h.b16 %v326
      %v659 = vunpack.c.l.b16 %v327
      %v660 = vunpack.c.h.b16 %v327
      %v661 = vunpack.c.l.b16 %v328
      %v662 = vunpack.c.h.b16 %v328
      %v663 = vunpack.c.l.b16 %v329
      %v664 = vunpack.c.h.b16 %v329
      %v665 = vunpack.c.l.b16 %v330
      %v666 = vunpack.c.h.b16 %v330
      %v667 = vunpack.c.l.b16 %v331
      %v668 = vunpack.c.h.b16 %v331
      %v669 = vunpack.c.l.b16 %v332
      %v670 = vunpack.c.h.b16 %v332
      %v671 = vunpack.c.l.b16 %v333
      %v672 = vunpack.c.h.b16 %v333
      %v673 = vunpack.c.l.b16 %v334
      %v674 = vunpack.c.h.b16 %v334
      %v675 = vunpack.c.l.b16 %v335
      %v676 = vunpack.c.h.b16 %v335
      %v677 = vunpack.c.l.b16 %v336
      %v678 = vunpack.c.h.b16 %v336
      %v679 = vunpack.c.l.b16 %v337
      %v680 = vunpack.c.h.b16 %v337
      %v681 = vunpack.c.l.b16 %v338
      %v682 = vunpack.c.h.b16 %v338
      %v683 = vunpack.c.l.b16 %v339
      %v684 = vunpack.c.h.b16 %v339
      %v685 = vunpack.c.l.b16 %v340
      %v686 = vunpack.c.h.b16 %v340
      %v687 = vunpack.c.l.b16 %v341
      %v688 = vunpack.c.h.b16 %v341
      %v689 = vunpack.c.l.b16 %v342
      %v690 = vunpack.c.h.b16 %v342
      %v691 = vunpack.c.l.b16 %v343
      %v692 = vunpack.c.h.b16 %v343
      %v693 = vunpack.c.l.b16 %v344
      %v694 = vunpack.c.h.b16 %v344
      %v695 = vunpack.c.l.b16 %v345
      %v696 = vunpack.c.h.b16 %v345
      %v697 = vunpack.c.l.b16 %v346
      %v698 = vunpack.c.h.b16 %v346
      %v699 = vunpack.c.l.b16 %v347
      %v700 = vunpack.c.h.b16 %v347
      %v701 = vunpack.c.l.b16 %v348
      %v702 = vunpack.c.h.b16 %v348
      %v703 = vunpack.c.l.b16 %v349
      %v704 = vunpack.c.h.b16 %v349
      %v705 = vunpack.c.l.b16 %v350
      %v706 = vunpack.c.h.b16 %v350
      %v707 = vunpack.c.l.b16 %v351
      %v708 = vunpack.c.h.b16 %v351
      %v709 = vunpack.c.l.b16 %v352
      %v710 = vunpack.c.h.b16 %v352
      %v711 = vunpack.c.l.b16 %v353
      %v712 = vunpack.c.h.b16 %v353
      %v713 = vunpack.c.l.b16 %v354
      %v714 = vunpack.c.h.b16 %v354
      %v715 = vunpack.c.l.b16 %v355
      %v716 = vunpack.c.h.b16 %v355
      %v717 = vunpack.c.l.b16 %v356
      %v718 = vunpack.c.h.b16 %v356
      %v719 = vunpack.c.l.b16 %v357
      %v720 = vunpack.c.h.b16 %v357
      %v721 = vunpack.c.l.b16 %v358
      %v722 = vunpack.c.h.b16 %v358
      %v723 = vunpack.c.l.b16 %v359
      %v724 = vunpack.c.h.b16 %v359
      %v725 = vunpack.c.l.b16 %v360
      %v726 = vunpack.c.h.b16 %v360
      %v727 = vunpack.c.l.b16 %v361
      %v728 = vunpack.c.h.b16 %v361
      %v729 = vunpack.c.l.b16 %v362
      %v730 = vunpack.c.h.b16 %v362
      %v731 = vunpack.c.l.b16 %v363
      %v732 = vunpack.c.h.b16 %v363
      %v733 = vunpack.c.l.b16 %v364
      %v734 = vunpack.c.h.b16 %v364
      %v735 = vunpack.c.l.b16 %v365
      %v736 = vunpack.c.h.b16 %v365
      %v737 = vunpack.c.l.b16 %v366
      %v738 = vunpack.c.h.b16 %v366
      %v739 = vunpack.c.l.b16 %v367
      %v740 = vunpack.c.h.b16 %v367
      %v741 = vunpack.c.l.b16 %v368
      %v742 = vunpack.c.h.b16 %v368
      %v743 = vunpack.c.l.b16 %v369
      %v744 = vunpack.c.h.b16 %v369
      %v745 = vunpack.c.l.b16 %v370
      %v746 = vunpack.c.h.b16 %v370
      %v747 = vunpack.c.l.b16 %v371
      %v748 = vunpack.c.h.b16 %v371
      %v749 = vunpack.c.l.b16 %v372
      %v750 = vunpack.c.h.b16 %v372
      %v751 = vunpack.c.l.b16 %v373
      %v752 = vunpack.c.h.b16 %v373
      %v753 = vunpack.c.l.b16 %v374
      %v754 = vunpack.c.h.b16 %v374
      %v755 = vunpack.c.l.b16 %v375
      %v756 = vunpack.c.h.b16 %v375
      %v757 = vunpack.c.l.b16 %v376
      %v758 = vunpack.c.h.b16 %v376
      %v759 = vunpack.c.l.b16 %v377
      %v760 = vunpack.c.h.b16 %v377
      %v761 = vunpack.c.l.b16 %v378
      %v762 = vunpack.c.h.b16 %v378
      %v763 = vunpack.c.l.b16 %v379
      %v764 = vunpack.c.h.b16 %v379
      %v765 = vunpack.c.l.b16 %v380
      %v766 = vunpack.c.h.b16 %v380
      %v767 = vunpack.c.l.b16 %v381
      %v768 = vunpack.c.h.b16 %v381
      %v769 = vunpack.c.l.b16 %v382
      %v770 = vunpack.c.h.b16 %v382
      %v771 = vunpack.c.l.b16 %v383
      %v772 = vunpack.c.h.b16 %v383
      %v773 = vunpack.c.l.b16 %v384
      %v774 = vunpack.c.h.b16 %v384
      %v775 = vunpack.c.l.b16 %v385
      %v776 = vunpack.c.h.b16 %v385
      %v777 = vunpack.c.l.b16 %v386
      %v778 = vunpack.c.h.b16 %v386
      %v779 = vunpack.c.l.b16 %v387
      %v780 = vunpack.c.h.b16 %v387
      %v781 = vunpack.c.l.b16 %v388
      %v782 = vunpack.c.h.b16 %v388
      %v783 = vunpack.c.l.b16 %v389
      %v784 = vunpack.c.h.b16 %v389
      %v785 = vunpack.c.l.b16 %v390
      %v786 = vunpack.c.h.b16 %v390
      %v787 = vunpack.c.l.b16 %v391
      %v788 = vunpack.c.h.b16 %v391
      %v789 = vunpack.c.l.b16 %v392
      %v790 = vunpack.c.h.b16 %v392
      %v791 = vunpack.c.l.b16 %v393
      %v792 = vunpack.c.h.b16 %v393
      %v793 = vunpack.c.l.b16 %v394
      %v794 = vunpack.c.h.b16 %v394
      %v795 = vunpack.c.l.b16 %v395
      %v796 = vunpack.c.h.b16 %v395
      %v797 = vunpack.c.l.b16 %v396
      %v798 = vunpack.c.h.b16 %v396
      %v799 = vunpack.c.l.b16 %v397
      %v800 = vunpack.c.h.b16 %v397
      %v801 = vpack.c.b16 %v547, %v545
      %v802 = vpack.c.b16 %v548, %v546
      %v803 = vpack.c.b16 %v551, %v549
      %v804 = vpack.c.b16 %v552, %v550
      %v805 = vpack.c.b16 %v555, %v553
      %v806 = vpack.c.b16 %v556, %v554
      %v807 = vpack.c.b16 %v559, %v557
      %v808 = vpack.c.b16 %v560, %v558
      %v809 = vpack.c.b16 %v563, %v561
      %v810 = vpack.c.b16 %v564, %v562
      %v811 = vpack.c.b16 %v567, %v565
      %v812 = vpack.c.b16 %v568, %v566
      %v813 = vpack.c.b16 %v571, %v569
      %v814 = vpack.c.b16 %v572, %v570
      %v815 = vpack.c.b16 %v575, %v573
      %v816 = vpack.c.b16 %v576, %v574
      %v817 = vpack.c.b16 %v579, %v577
      %v818 = vpack.c.b16 %v580, %v578
      %v819 = vpack.c.b16 %v583, %v581
      %v820 = vpack.c.b16 %v584, %v582
      %v821 = vpack.c.b16 %v587, %v585
      %v822 = vpack.c.b16 %v588, %v586
      %v823 = vpack.c.b16 %v591, %v589
      %v824 = vpack.c.b16 %v592, %v590
      %v825 = vpack.c.b16 %v595, %v593
      %v826 = vpack.c.b16 %v596, %v594
      %v827 = vpack.c.b16 %v599, %v597
      %v828 = vpack.c.b16 %v600, %v598
      %v829 = vpack.c.b16 %v603, %v601
      %v830 = vpack.c.b16 %v604, %v602
      %v831 = vpack.c.b16 %v607, %v605
      %v832 = vpack.c.b16 %v608, %v606
      %v833 = vpack.c.b16 %v611, %v609
      %v834 = vpack.c.b16 %v612, %v610
      %v835 = vpack.c.b16 %v615, %v613
      %v836 = vpack.c.b16 %v616, %v614
      %v837 = vpack.c.b16 %v619, %v617
      %v838 = vpack.c.b16 %v620, %v618
      %v839 = vpack.c.b16 %v623, %v621
      %v840 = vpack.c.b16 %v624, %v622
      %v841 = vpack.c.b16 %v627, %v625
      %v842 = vpack.c.b16 %v628, %v626
      %v843 = vpack.c.b16 %v631, %v629
      %v844 = vpack.c.b16 %v632, %v630
      %v845 = vpack.c.b16 %v635, %v633
      %v846 = vpack.c.b16 %v636, %v634
      %v847 = vpack.c.b16 %v639, %v637
      %v848 = vpack.c.b16 %v640, %v638
      %v849 = vpack.c.b16 %v643, %v641
      %v850 = vpack.c.b16 %v644, %v642
      %v851 = vpack.c.b16 %v647, %v645
      %v852 = vpack.c.b16 %v648, %v646
      %v853 = vpack.c.b16 %v651, %v649
      %v854 = vpack.c.b16 %v652, %v650
      %v855 = vpack.c.b16 %v655, %v653
      %v856 = vpack.c.b16 %v656, %v654
      %v857 = vpack.c.b16 %v659, %v657
      %v858 = vpack.c.b16 %v660, %v658
      %v859 = vpack.c.b16 %v663, %v661
      %v860 = vpack.c.b16 %v664, %v662
      %v861 = vpack.c.b16 %v667, %v665
      %v862 = vpack.c.b16 %v668, %v666
      %v863 = vpack.c.b16 %v671, %v669
      %v864 = vpack.c.b16 %v672, %v670
      %v865 = vpack.c.b16 %v675, %v673
      %v866 = vpack.c.b16 %v676, %v674
      %v867 = vpack.c.b16 %v679, %v677
      %v868 = vpack.c.b16 %v680, %v678
      %v869 = vpack.c.b16 %v683, %v681
      %v870 = vpack.c.b16 %v684, %v682
      %v871 = vpack.c.b16 %v687, %v685
      %v872 = vpack.c.b16 %v688, %v686
      %v873 = vpack.c.b16 %v691, %v689
      %v874 = vpack.c.b16 %v692, %v690
      %v875 = vpack.c.b16 %v695, %v693
      %v876 = vpack.c.b16 %v696, %v694
      %v877 = vpack.c.b16 %v699, %v697
      %v878 = vpack.c.b16 %v700, %v698
      %v879 = vpack.c.b16 %v703, %v701
      %v880 = vpack.c.b16 %v704, %v702
      %v881 = vpack.c.b16 %v707, %v705
      %v882 = vpack.c.b16 %v708, %v706
      %v883 = vpack.c.b16 %v711, %v709
      %v884 = vpack.c.b16 %v712, %v710
      %v885 = vpack.c.b16 %v715, %v713
      %v886 = vpack.c.b16 %v716, %v714
      %v887 = vpack.c.b16 %v719, %v717
      %v888 = vpack.c.b16 %v720, %v718
      %v889 = vpack.c.b16 %v723, %v721
      %v890 = vpack.c.b16 %v724, %v722
      %v891 = vpack.c.b16 %v727, %v725
      %v892 = vpack.c.b16 %v728, %v726
      %v893 = vpack.c.b16 %v731, %v729
      %v894 = vpack.c.b16 %v732, %v730
      %v895 = vpack.c.b16 %v735, %v733
      %v896 = vpack.c.b16 %v736, %v734
      %v897 = vpack.c.b16 %v739, %v737
      %v898 = vpack.c.b16 %v740, %v738
      %v899 = vpack.c.b16 %v743, %v741
      %v900 = vpack.c.b16 %v744, %v742
      %v901 = vpack.c.b16 %v747, %v745
      %v902 = vpack.c.b16 %v748, %v746
      %v903 = vpack.c.b16 %v751, %v749
      %v904 = vpack.c.b16 %v752, %v750
      %v905 = vpack.c.b16 %v755, %v753
      %v906 = vpack.c.b16 %v756, %v754
      %v907 = vpack.c.b16 %v759, %v757
      %v908 = vpack.c.b16 %v760, %v758
      %v909 = vpack.c.b16 %v763, %v761
      %v910 = vpack.c.b16 %v764, %v762
      %v911 = vpack.c.b16 %v767, %v765
      %v912 = vpack.c.b16 %v768, %v766
      %v913 = vpack.c.b16 %v771, %v769
      %v914 = vpack.c.b16 %v772, %v770
      %v915 = vpack.c.b16 %v775, %v773
      %v916 = vpack.c.b16 %v776, %v774
      %v917 = vpack.c.b16 %v779, %v777
      %v918 = vpack.c.b16 %v780, %v778
      %v919 = vpack.c.b16 %v783, %v781
      %v920 = vpack.c.b16 %v784, %v782
      %v921 = vpack.c.b16 %v787, %v785
      %v922 = vpack.c.b16 %v788, %v786
      %v923 = vpack.c.b16 %v791, %v789
      %v924 = vpack.c.b16 %v792, %v790
      %v925 = vpack.c.b16 %v795, %v793
      %v926 = vpack.c.b16 %v796, %v794
      %v927 = vpack.c.b16 %v799, %v797
      %v928 = vpack.c.b16 %v800, %v798
      %v1012 = vunpack.c.l.b16 %v398
      %v1013 = vunpack.c.l.b16 %v399
      %v1014 = vunpack.c.l.b16 %v400
      %v1015 = vunpack.c.l.b16 %v401
      %v1016 = vunpack.c.l.b16 %v402
      %v1017 = vunpack.c.l.b16 %v403
      %v1018 = vunpack.c.l.b16 %v404
      %v1019 = vunpack.c.l.b16 %v405
      %v1020 = vunpack.c.l.b16 %v406
      %v1021 = vunpack.c.l.b16 %v407
      %v1022 = vunpack.c.l.b16 %v408
      %v1023 = vunpack.c.l.b16 %v409
      %v1024 = vunpack.c.l.b16 %v410
      %v1025 = vunpack.c.l.b16 %v411
      %v1026 = vunpack.c.l.b16 %v412
      %v1027 = vunpack.c.l.b16 %v413
      %v1028 = vunpack.c.l.b16 %v414
      %v1029 = vunpack.c.l.b16 %v415
      %v1030 = vunpack.c.l.b16 %v416
      %v1031 = vpack.c.b16 %v1013, %v1012
      %v1032 = vpack.c.b16 %v1015, %v1014
      %v1033 = vpack.c.b16 %v1017, %v1016
      %v1034 = vpack.c.b16 %v1019, %v1018
      %v1035 = vpack.c.b16 %v1021, %v1020
      %v1036 = vpack.c.b16 %v1023, %v1022
      %v1037 = vpack.c.b16 %v1025, %v1024
      %v1038 = vpack.c.b16 %v1027, %v1026
      %v1039 = vpack.c.b16 %v1029, %v1028
      %v1040 = vpack.c.b16 %v1030, %v1030
      %vm1050 = vcmask 154624
      %v1052 = vsel %vm1050, %v802, 0
      %v1055 = vsel %vm1050, %v804, 0
      %v1058 = vsel %vm1050, %v806, 0
      %v1061 = vsel %vm1050, %v808, 0
      %v1064 = vsel %vm1050, %v810, 0
      %v1067 = vsel %vm1050, %v812, 0
      %v1070 = vsel %vm1050, %v814, 0
      %v1073 = vsel %vm1050, %v816, 0
      %v1076 = vsel %vm1050, %v818, 0
      %v1079 = vsel %vm1050, %v820, 0
      %v1082 = vsel %vm1050, %v822, 0
      %v1085 = vsel %vm1050, %v824, 0
      %v1088 = vsel %vm1050, %v826, 0
      %v1091 = vsel %vm1050, %v828, 0
      %v1094 = vsel %vm1050, %v830, 0
      %v1097 = vsel %vm1050, %v832, 0
      %v1100 = vsel %vm1050, %v834, 0
      %v1103 = vsel %vm1050, %v836, 0
      %v1106 = vsel %vm1050, %v838, 0
      %v1109 = vsel %vm1050, %v840, 0
      %v1112 = vsel %vm1050, %v842, 0
      %v1115 = vsel %vm1050, %v844, 0
      %v1118 = vsel %vm1050, %v846, 0
      %v1121 = vsel %vm1050, %v848, 0
      %v1124 = vsel %vm1050, %v850, 0
      %v1127 = vsel %vm1050, %v852, 0
      %v1130 = vsel %vm1050, %v854, 0
      %v1133 = vsel %vm1050, %v856, 0
      %v1136 = vsel %vm1050, %v858, 0
      %v1139 = vsel %vm1050, %v860, 0
      %v1142 = vsel %vm1050, %v862, 0
      %v1145 = vsel %vm1050, %v864, 0
      %v1148 = vsel %vm1050, %v866, 0
      %v1151 = vsel %vm1050, %v868, 0
      %v1154 = vsel %vm1050, %v870, 0
      %v1157 = vsel %vm1050, %v872, 0
      %v1160 = vsel %vm1050, %v874, 0
      %v1163 = vsel %vm1050, %v876, 0
      %v1166 = vsel %vm1050, %v878, 0
      %v1169 = vsel %vm1050, %v880, 0
      %v1172 = vsel %vm1050, %v882, 0
      %v1175 = vsel %vm1050, %v884, 0
      %v1178 = vsel %vm1050, %v886, 0
      %v1181 = vsel %vm1050, %v888, 0
      %v1184 = vsel %vm1050, %v890, 0
      %v1187 = vsel %vm1050, %v892, 0
      %v1190 = vsel %vm1050, %v894, 0
      %v1193 = vsel %vm1050, %v896, 0
      %v1196 = vsel %vm1050, %v898, 0
      %v1199 = vsel %vm1050, %v900, 0
      %v1202 = vsel %vm1050, %v902, 0
      %v1205 = vsel %vm1050, %v904, 0
      %v1208 = vsel %vm1050, %v906, 0
      %v1211 = vsel %vm1050, %v908, 0
      %v1214 = vsel %vm1050, %v910, 0
      %v1217 = vsel %vm1050, %v912, 0
      %v1220 = vsel %vm1050, %v914, 0
      %v1223 = vsel %vm1050, %v916, 0
      %v1226 = vsel %vm1050, %v918, 0
      %v1229 = vsel %vm1050, %v920, 0
      %v1232 = vsel %vm1050, %v922, 0
      %v1235 = vsel %vm1050, %v924, 0
      %v1238 = vsel %vm1050, %v926, 0
      %v1241 = vsel %vm1050, %v928, 0
      %vm1243 = vcmask 1040384
      %vm1244 = vcmask 1041408
      %v1245 = vsel %vm1243, 4294967295, 65535
      %v1246 = vsel %vm1244, %v1245, 0
      %v1248 = vand.u32 %v1040, %v1246
      %1250 = vmatprep.subr.bf16.mxu0 0
      %1251 = vmatpush1.bf16.msra.mxu0 %v1031
      %1252 = vmatprep.subr.bf16.mxu0 0
      %1253 = vmatpush1.bf16.msra.mxu0 %v1032
      %1254 = vmatprep.subr.bf16.mxu0 0
      %1255 = vmatpush1.bf16.msra.mxu0 %v1033
      %1256 = vmatprep.subr.bf16.mxu0 0
      %1257 = vmatpush1.bf16.msra.mxu0 %v1034
      %1258 = vmatprep.subr.bf16.mxu0 0
      %1259 = vmatpush1.bf16.msra.mxu0 %v1035
      %1260 = vmatprep.subr.bf16.mxu0 0
      %1261 = vmatpush1.bf16.msra.mxu0 %v1036
      %1262 = vmatprep.subr.bf16.mxu0 0
      %1263 = vmatpush1.bf16.msra.mxu0 %v1037
      %1264 = vmatprep.subr.bf16.mxu0 0
      %1265 = vmatpush1.bf16.msra.mxu0 %v1038
      %1266 = vmatprep.subr.bf16.mxu0 0
      %1267 = vmatpush1.bf16.msra.mxu0 %v1039
      %1268 = vmatprep.subr.bf16.mxu0 0
      %1269 = vmatpush1.bf16.msra.mxu0 %v1248
      %1270 = vmatprep.subr.bf16.mxu0 0
      %1271 = vmatpush1.bf16.msra.mxu0 0
      %1272 = vmatprep.subr.bf16.mxu0 0
      %1273 = vmatpush1.bf16.msra.mxu0 0
      %1274 = vmatprep.subr.bf16.mxu0 0
      %1275 = vmatpush1.bf16.msra.mxu0 0
      %1276 = vmatprep.subr.bf16.mxu0 0
      %1277 = vmatpush1.bf16.msra.mxu0 0
      %1278 = vmatprep.subr.bf16.mxu0 0
      %1279 = vmatpush1.bf16.msra.mxu0 0
      %1280 = vmatprep.subr.bf16.mxu0 0
      %1281 = vmatpush1.bf16.msra.mxu0 0
      %1282 = vmatprep.mubr.bf16.mxu0 %v1052
      %1283 = vmatmul.mubr.bf16.gmra.mrb[0].mxu0 %v801
      %v1284 = vpop.f32.mrb[0].mxu0
      %v1285 = vadd.f32 0.0, %v1284
      %v1286 = vpop.f32.mrb[0].mxu0
      %v1287 = vpop.f32.mrb[0].mxu0
      %v1288 = vadd.f32 0.0, %v1287
      %v1289 = vpop.f32.mrb[0].mxu0
      %1290 = vmatprep.mubr.bf16.mxu0 %v1055
      %1291 = vmatmul.mubr.bf16.gmra.mrb[0].mxu0 %v803
      %v1292 = vpop.f32.mrb[0].mxu0
      %v1293 = vadd.f32 0.0, %v1292
      %v1294 = vpop.f32.mrb[0].mxu0
      %v1295 = vpop.f32.mrb[0].mxu0
      %v1296 = vadd.f32 0.0, %v1295
      %v1297 = vpop.f32.mrb[0].mxu0
      %1298 = vmatprep.mubr.bf16.mxu0 %v1058
      %1299 = vmatmul.mubr.bf16.gmra.mrb[0].mxu0 %v805
      %v1300 = vpop.f32.mrb[0].mxu0
      %v1301 = vadd.f32 0.0, %v1300
      %v1302 = vpop.f32.mrb[0].mxu0
      %v1303 = vpop.f32.mrb[0].mxu0
      %v1304 = vadd.f32 0.0, %v1303
      %v1305 = vpop.f32.mrb[0].mxu0
      %1306 = vmatprep.mubr.bf16.mxu0 %v1061
      %1307 = vmatmul.mubr.bf16.gmra.mrb[0].mxu0 %v807
      %v1308 = vpop.f32.mrb[0].mxu0
      %v1309 = vadd.f32 0.0, %v1308
      %v1310 = vpop.f32.mrb[0].mxu0
      %v1311 = vpop.f32.mrb[0].mxu0
      %v1312 = vadd.f32 0.0, %v1311
      %v1313 = vpop.f32.mrb[0].mxu0
      %1314 = vmatprep.mubr.bf16.mxu0 %v1064
      %1315 = vmatmul.mubr.bf16.gmra.mrb[0].mxu0 %v809
      %v1316 = vpop.f32.mrb[0].mxu0
      %v1317 = vadd.f32 0.0, %v1316
      %v1318 = vpop.f32.mrb[0].mxu0
      %v1319 = vpop.f32.mrb[0].mxu0
      %v1320 = vadd.f32 0.0, %v1319
      %v1321 = vpop.f32.mrb[0].mxu0
      %1322 = vmatprep.mubr.bf16.mxu0 %v1067
      %1323 = vmatmul.mubr.bf16.gmra.mrb[0].mxu0 %v811
      %v1324 = vpop.f32.mrb[0].mxu0
      %v1325 = vadd.f32 0.0, %v1324
      %v1326 = vpop.f32.mrb[0].mxu0
      %v1327 = vpop.f32.mrb[0].mxu0
      %v1328 = vadd.f32 0.0, %v1327
      %v1329 = vpop.f32.mrb[0].mxu0
      %1330 = vmatprep.mubr.bf16.mxu0 %v1070
      %1331 = vmatmul.mubr.bf16.gmra.mrb[0].mxu0 %v813
      %v1332 = vpop.f32.mrb[0].mxu0
      %v1333 = vadd.f32 0.0, %v1332
      %v1334 = vpop.f32.mrb[0].mxu0
      %v1335 = vpop.f32.mrb[0].mxu0
      %v1336 = vadd.f32 0.0, %v1335
      %v1337 = vpop.f32.mrb[0].mxu0
      %1338 = vmatprep.mubr.bf16.mxu0 %v1073
      %1339 = vmatmul.mubr.bf16.gmra.mrb[0].mxu0 %v815
      %v1340 = vpop.f32.mrb[0].mxu0
      %v1341 = vadd.f32 0.0, %v1340
      %v1342 = vpop.f32.mrb[0].mxu0
      %v1343 = vpop.f32.mrb[0].mxu0
      %v1344 = vadd.f32 0.0, %v1343
      %v1345 = vpop.f32.mrb[0].mxu0
      %1346 = vmatprep.mubr.bf16.mxu0 %v1076
      %1347 = vmatmul.mubr.bf16.gmra.mrb[0].mxu0 %v817
      %v1348 = vpop.f32.mrb[0].mxu0
      %v1349 = vadd.f32 0.0, %v1348
      %v1350 = vpop.f32.mrb[0].mxu0
      %v1351 = vpop.f32.mrb[0].mxu0
      %v1352 = vadd.f32 0.0, %v1351
      %v1353 = vpop.f32.mrb[0].mxu0
      %1354 = vmatprep.mubr.bf16.mxu0 %v1079
      %1355 = vmatmul.mubr.bf16.gmra.mrb[0].mxu0 %v819
      %v1356 = vpop.f32.mrb[0].mxu0
      %v1357 = vadd.f32 0.0, %v1356
      %v1358 = vpop.f32.mrb[0].mxu0
      %v1359 = vpop.f32.mrb[0].mxu0
      %v1360 = vadd.f32 0.0, %v1359
      %v1361 = vpop.f32.mrb[0].mxu0
      %1362 = vmatprep.mubr.bf16.mxu0 %v1082
      %1363 = vmatmul.mubr.bf16.gmra.mrb[0].mxu0 %v821
      %v1364 = vpop.f32.mrb[0].mxu0
      %v1365 = vadd.f32 0.0, %v1364
      %v1366 = vpop.f32.mrb[0].mxu0
      %v1367 = vpop.f32.mrb[0].mxu0
      %v1368 = vadd.f32 0.0, %v1367
      %v1369 = vpop.f32.mrb[0].mxu0
      %1370 = vmatprep.mubr.bf16.mxu0 %v1085
      %1371 = vmatmul.mubr.bf16.gmra.mrb[0].mxu0 %v823
      %v1372 = vpop.f32.mrb[0].mxu0
      %v1373 = vadd.f32 0.0, %v1372
      %v1374 = vpop.f32.mrb[0].mxu0
      %v1375 = vpop.f32.mrb[0].mxu0
      %v1376 = vadd.f32 0.0, %v1375
      %v1377 = vpop.f32.mrb[0].mxu0
      %1378 = vmatprep.mubr.bf16.mxu0 %v1088
      %1379 = vmatmul.mubr.bf16.gmra.mrb[0].mxu0 %v825
      %v1380 = vpop.f32.mrb[0].mxu0
      %v1381 = vadd.f32 0.0, %v1380
      %v1382 = vpop.f32.mrb[0].mxu0
      %v1383 = vpop.f32.mrb[0].mxu0
      %v1384 = vadd.f32 0.0, %v1383
      %v1385 = vpop.f32.mrb[0].mxu0
      %1386 = vmatprep.mubr.bf16.mxu0 %v1091
      %1387 = vmatmul.mubr.bf16.gmra.mrb[0].mxu0 %v827
      %v1388 = vpop.f32.mrb[0].mxu0
      %v1389 = vadd.f32 0.0, %v1388
      %v1390 = vpop.f32.mrb[0].mxu0
      %v1391 = vpop.f32.mrb[0].mxu0
      %v1392 = vadd.f32 0.0, %v1391
      %v1393 = vpop.f32.mrb[0].mxu0
      %1394 = vmatprep.mubr.bf16.mxu0 %v1094
      %1395 = vmatmul.mubr.bf16.gmra.mrb[0].mxu0 %v829
      %v1396 = vpop.f32.mrb[0].mxu0
      %v1397 = vadd.f32 0.0, %v1396
      %v1398 = vpop.f32.mrb[0].mxu0
      %v1399 = vpop.f32.mrb[0].mxu0
      %v1400 = vadd.f32 0.0, %v1399
      %v1401 = vpop.f32.mrb[0].mxu0
      %1402 = vmatprep.mubr.bf16.mxu0 %v1097
      %1403 = vmatmul.mubr.bf16.gmra.mrb[0].mxu0 %v831
      %v1404 = vpop.f32.mrb[0].mxu0
      %v1405 = vadd.f32 0.0, %v1404
      %v1406 = vpop.f32.mrb[0].mxu0
      %v1407 = vpop.f32.mrb[0].mxu0
      %v1408 = vadd.f32 0.0, %v1407
      %v1409 = vpop.f32.mrb[0].mxu0
      %1410 = vmatprep.mubr.bf16.mxu0 %v1100
      %1411 = vmatmul.mubr.bf16.gmra.mrb[0].mxu0 %v833
      %v1412 = vpop.f32.mrb[0].mxu0
      %v1413 = vadd.f32 0.0, %v1412
      %v1414 = vpop.f32.mrb[0].mxu0
      %v1415 = vpop.f32.mrb[0].mxu0
      %v1416 = vadd.f32 0.0, %v1415
      %v1417 = vpop.f32.mrb[0].mxu0
      %1418 = vmatprep.mubr.bf16.mxu0 %v1103
      %1419 = vmatmul.mubr.bf16.gmra.mrb[0].mxu0 %v835
      %v1420 = vpop.f32.mrb[0].mxu0
      %v1421 = vadd.f32 0.0, %v1420
      %v1422 = vpop.f32.mrb[0].mxu0
      %v1423 = vpop.f32.mrb[0].mxu0
      %v1424 = vadd.f32 0.0, %v1423
      %v1425 = vpop.f32.mrb[0].mxu0
      %1426 = vmatprep.mubr.bf16.mxu0 %v1106
      %1427 = vmatmul.mubr.bf16.gmra.mrb[0].mxu0 %v837
      %v1428 = vpop.f32.mrb[0].mxu0
      %v1429 = vadd.f32 0.0, %v1428
      %v1430 = vpop.f32.mrb[0].mxu0
      %v1431 = vpop.f32.mrb[0].mxu0
      %v1432 = vadd.f32 0.0, %v1431
      %v1433 = vpop.f32.mrb[0].mxu0
      %1434 = vmatprep.mubr.bf16.mxu0 %v1109
      %1435 = vmatmul.mubr.bf16.gmra.mrb[0].mxu0 %v839
      %v1436 = vpop.f32.mrb[0].mxu0
      %v1437 = vadd.f32 0.0, %v1436
      %v1438 = vpop.f32.mrb[0].mxu0
      %v1439 = vpop.f32.mrb[0].mxu0
      %v1440 = vadd.f32 0.0, %v1439
      %v1441 = vpop.f32.mrb[0].mxu0
      %1442 = vmatprep.mubr.bf16.mxu0 %v1112
      %1443 = vmatmul.mubr.bf16.gmra.mrb[0].mxu0 %v841
      %v1444 = vpop.f32.mrb[0].mxu0
      %v1445 = vadd.f32 0.0, %v1444
      %v1446 = vpop.f32.mrb[0].mxu0
      %v1447 = vpop.f32.mrb[0].mxu0
      %v1448 = vadd.f32 0.0, %v1447
      %v1449 = vpop.f32.mrb[0].mxu0
      %1450 = vmatprep.mubr.bf16.mxu0 %v1115
      %1451 = vmatmul.mubr.bf16.gmra.mrb[0].mxu0 %v843
      %v1452 = vpop.f32.mrb[0].mxu0
      %v1453 = vadd.f32 0.0, %v1452
      %v1454 = vpop.f32.mrb[0].mxu0
      %v1455 = vpop.f32.mrb[0].mxu0
      %v1456 = vadd.f32 0.0, %v1455
      %v1457 = vpop.f32.mrb[0].mxu0
      %1458 = vmatprep.mubr.bf16.mxu0 %v1118
      %1459 = vmatmul.mubr.bf16.gmra.mrb[0].mxu0 %v845
      %v1460 = vpop.f32.mrb[0].mxu0
      %v1461 = vadd.f32 0.0, %v1460
      %v1462 = vpop.f32.mrb[0].mxu0
      %v1463 = vpop.f32.mrb[0].mxu0
      %v1464 = vadd.f32 0.0, %v1463
      %v1465 = vpop.f32.mrb[0].mxu0
      %1466 = vmatprep.mubr.bf16.mxu0 %v1121
      %1467 = vmatmul.mubr.bf16.gmra.mrb[0].mxu0 %v847
      %v1468 = vpop.f32.mrb[0].mxu0
      %v1469 = vadd.f32 0.0, %v1468
      %v1470 = vpop.f32.mrb[0].mxu0
      %v1471 = vpop.f32.mrb[0].mxu0
      %v1472 = vadd.f32 0.0, %v1471
      %v1473 = vpop.f32.mrb[0].mxu0
      %1474 = vmatprep.mubr.bf16.mxu0 %v1124
      %1475 = vmatmul.mubr.bf16.gmra.mrb[0].mxu0 %v849
      %v1476 = vpop.f32.mrb[0].mxu0
      %v1477 = vadd.f32 0.0, %v1476
      %v1478 = vpop.f32.mrb[0].mxu0
      %v1479 = vpop.f32.mrb[0].mxu0
      %v1480 = vadd.f32 0.0, %v1479
      %v1481 = vpop.f32.mrb[0].mxu0
      %1482 = vmatprep.mubr.bf16.mxu0 %v1127
      %1483 = vmatmul.mubr.bf16.gmra.mrb[0].mxu0 %v851
      %v1484 = vpop.f32.mrb[0].mxu0
      %v1485 = vadd.f32 0.0, %v1484
      %v1486 = vpop.f32.mrb[0].mxu0
      %v1487 = vpop.f32.mrb[0].mxu0
      %v1488 = vadd.f32 0.0, %v1487
      %v1489 = vpop.f32.mrb[0].mxu0
      %1490 = vmatprep.mubr.bf16.mxu0 %v1130
      %1491 = vmatmul.mubr.bf16.gmra.mrb[0].mxu0 %v853
      %v1492 = vpop.f32.mrb[0].mxu0
      %v1493 = vadd.f32 0.0, %v1492
      %v1494 = vpop.f32.mrb[0].mxu0
      %v1495 = vpop.f32.mrb[0].mxu0
      %v1496 = vadd.f32 0.0, %v1495
      %v1497 = vpop.f32.mrb[0].mxu0
      %1498 = vmatprep.mubr.bf16.mxu0 %v1133
      %1499 = vmatmul.mubr.bf16.gmra.mrb[0].mxu0 %v855
      %v1500 = vpop.f32.mrb[0].mxu0
      %v1501 = vadd.f32 0.0, %v1500
      %v1502 = vpop.f32.mrb[0].mxu0
      %v1503 = vpop.f32.mrb[0].mxu0
      %v1504 = vadd.f32 0.0, %v1503
      %v1505 = vpop.f32.mrb[0].mxu0
      %1506 = vmatprep.mubr.bf16.mxu0 %v1136
      %1507 = vmatmul.mubr.bf16.gmra.mrb[0].mxu0 %v857
      %v1508 = vpop.f32.mrb[0].mxu0
      %v1509 = vadd.f32 0.0, %v1508
      %v1510 = vpop.f32.mrb[0].mxu0
      %v1511 = vpop.f32.mrb[0].mxu0
      %v1512 = vadd.f32 0.0, %v1511
      %v1513 = vpop.f32.mrb[0].mxu0
      %1514 = vmatprep.mubr.bf16.mxu0 %v1139
      %1515 = vmatmul.mubr.bf16.gmra.mrb[0].mxu0 %v859
      %v1516 = vpop.f32.mrb[0].mxu0
      %v1517 = vadd.f32 0.0, %v1516
      %v1518 = vpop.f32.mrb[0].mxu0
      %v1519 = vpop.f32.mrb[0].mxu0
      %v1520 = vadd.f32 0.0, %v1519
      %v1521 = vpop.f32.mrb[0].mxu0
      %1522 = vmatprep.mubr.bf16.mxu0 %v1142
      %1523 = vmatmul.mubr.bf16.gmra.mrb[0].mxu0 %v861
      %v1524 = vpop.f32.mrb[0].mxu0
      %v1525 = vadd.f32 0.0, %v1524
      %v1526 = vpop.f32.mrb[0].mxu0
      %v1527 = vpop.f32.mrb[0].mxu0
      %v1528 = vadd.f32 0.0, %v1527
      %v1529 = vpop.f32.mrb[0].mxu0
      %1530 = vmatprep.mubr.bf16.mxu0 %v1145
      %1531 = vmatmul.mubr.bf16.gmra.mrb[0].mxu0 %v863
      %v1532 = vpop.f32.mrb[0].mxu0
      %v1533 = vadd.f32 0.0, %v1532
      %v1534 = vpop.f32.mrb[0].mxu0
      %v1535 = vpop.f32.mrb[0].mxu0
      %v1536 = vadd.f32 0.0, %v1535
      %v1537 = vpop.f32.mrb[0].mxu0
      %1538 = vmatprep.mubr.bf16.mxu0 %v1148
      %1539 = vmatmul.mubr.bf16.gmra.mrb[0].mxu0 %v865
      %v1540 = vpop.f32.mrb[0].mxu0
      %v1541 = vadd.f32 0.0, %v1540
      %v1542 = vpop.f32.mrb[0].mxu0
      %v1543 = vpop.f32.mrb[0].mxu0
      %v1544 = vadd.f32 0.0, %v1543
      %v1545 = vpop.f32.mrb[0].mxu0
      %1546 = vmatprep.mubr.bf16.mxu0 %v1151
      %1547 = vmatmul.mubr.bf16.gmra.mrb[0].mxu0 %v867
      %v1548 = vpop.f32.mrb[0].mxu0
      %v1549 = vadd.f32 0.0, %v1548
      %v1550 = vpop.f32.mrb[0].mxu0
      %v1551 = vpop.f32.mrb[0].mxu0
      %v1552 = vadd.f32 0.0, %v1551
      %v1553 = vpop.f32.mrb[0].mxu0
      %1554 = vmatprep.mubr.bf16.mxu0 %v1154
      %1555 = vmatmul.mubr.bf16.gmra.mrb[0].mxu0 %v869
      %v1556 = vpop.f32.mrb[0].mxu0
      %v1557 = vadd.f32 0.0, %v1556
      %v1558 = vpop.f32.mrb[0].mxu0
      %v1559 = vpop.f32.mrb[0].mxu0
      %v1560 = vadd.f32 0.0, %v1559
      %v1561 = vpop.f32.mrb[0].mxu0
      %1562 = vmatprep.mubr.bf16.mxu0 %v1157
      %1563 = vmatmul.mubr.bf16.gmra.mrb[0].mxu0 %v871
      %v1564 = vpop.f32.mrb[0].mxu0
      %v1565 = vadd.f32 0.0, %v1564
      %v1566 = vpop.f32.mrb[0].mxu0
      %v1567 = vpop.f32.mrb[0].mxu0
      %v1568 = vadd.f32 0.0, %v1567
      %v1569 = vpop.f32.mrb[0].mxu0
      %1570 = vmatprep.mubr.bf16.mxu0 %v1160
      %1571 = vmatmul.mubr.bf16.gmra.mrb[0].mxu0 %v873
      %v1572 = vpop.f32.mrb[0].mxu0
      %v1573 = vadd.f32 0.0, %v1572
      %v1574 = vpop.f32.mrb[0].mxu0
      %v1575 = vpop.f32.mrb[0].mxu0
      %v1576 = vadd.f32 0.0, %v1575
      %v1577 = vpop.f32.mrb[0].mxu0
      %1578 = vmatprep.mubr.bf16.mxu0 %v1163
      %1579 = vmatmul.mubr.bf16.gmra.mrb[0].mxu0 %v875
      %v1580 = vpop.f32.mrb[0].mxu0
      %v1581 = vadd.f32 0.0, %v1580
      %v1582 = vpop.f32.mrb[0].mxu0
      %v1583 = vpop.f32.mrb[0].mxu0
      %v1584 = vadd.f32 0.0, %v1583
      %v1585 = vpop.f32.mrb[0].mxu0
      %1586 = vmatprep.mubr.bf16.mxu0 %v1166
      %1587 = vmatmul.mubr.bf16.gmra.mrb[0].mxu0 %v877
      %v1588 = vpop.f32.mrb[0].mxu0
      %v1589 = vadd.f32 0.0, %v1588
      %v1590 = vpop.f32.mrb[0].mxu0
      %v1591 = vpop.f32.mrb[0].mxu0
      %v1592 = vadd.f32 0.0, %v1591
      %v1593 = vpop.f32.mrb[0].mxu0
      %1594 = vmatprep.mubr.bf16.mxu0 %v1169
      %1595 = vmatmul.mubr.bf16.gmra.mrb[0].mxu0 %v879
      %v1596 = vpop.f32.mrb[0].mxu0
      %v1597 = vadd.f32 0.0, %v1596
      %v1598 = vpop.f32.mrb[0].mxu0
      %v1599 = vpop.f32.mrb[0].mxu0
      %v1600 = vadd.f32 0.0, %v1599
      %v1601 = vpop.f32.mrb[0].mxu0
      %1602 = vmatprep.mubr.bf16.mxu0 %v1172
      %1603 = vmatmul.mubr.bf16.gmra.mrb[0].mxu0 %v881
      %v1604 = vpop.f32.mrb[0].mxu0
      %v1605 = vadd.f32 0.0, %v1604
      %v1606 = vpop.f32.mrb[0].mxu0
      %v1607 = vpop.f32.mrb[0].mxu0
      %v1608 = vadd.f32 0.0, %v1607
      %v1609 = vpop.f32.mrb[0].mxu0
      %1610 = vmatprep.mubr.bf16.mxu0 %v1175
      %1611 = vmatmul.mubr.bf16.gmra.mrb[0].mxu0 %v883
      %v1612 = vpop.f32.mrb[0].mxu0
      %v1613 = vadd.f32 0.0, %v1612
      %v1614 = vpop.f32.mrb[0].mxu0
      %v1615 = vpop.f32.mrb[0].mxu0
      %v1616 = vadd.f32 0.0, %v1615
      %v1617 = vpop.f32.mrb[0].mxu0
      %1618 = vmatprep.mubr.bf16.mxu0 %v1178
      %1619 = vmatmul.mubr.bf16.gmra.mrb[0].mxu0 %v885
      %v1620 = vpop.f32.mrb[0].mxu0
      %v1621 = vadd.f32 0.0, %v1620
      %v1622 = vpop.f32.mrb[0].mxu0
      %v1623 = vpop.f32.mrb[0].mxu0
      %v1624 = vadd.f32 0.0, %v1623
      %v1625 = vpop.f32.mrb[0].mxu0
      %1626 = vmatprep.mubr.bf16.mxu0 %v1181
      %1627 = vmatmul.mubr.bf16.gmra.mrb[0].mxu0 %v887
      %v1628 = vpop.f32.mrb[0].mxu0
      %v1629 = vadd.f32 0.0, %v1628
      %v1630 = vpop.f32.mrb[0].mxu0
      %v1631 = vpop.f32.mrb[0].mxu0
      %v1632 = vadd.f32 0.0, %v1631
      %v1633 = vpop.f32.mrb[0].mxu0
      %1634 = vmatprep.mubr.bf16.mxu0 %v1184
      %1635 = vmatmul.mubr.bf16.gmra.mrb[0].mxu0 %v889
      %v1636 = vpop.f32.mrb[0].mxu0
      %v1637 = vadd.f32 0.0, %v1636
      %v1638 = vpop.f32.mrb[0].mxu0
      %v1639 = vpop.f32.mrb[0].mxu0
      %v1640 = vadd.f32 0.0, %v1639
      %v1641 = vpop.f32.mrb[0].mxu0
      %1642 = vmatprep.mubr.bf16.mxu0 %v1187
      %1643 = vmatmul.mubr.bf16.gmra.mrb[0].mxu0 %v891
      %v1644 = vpop.f32.mrb[0].mxu0
      %v1645 = vadd.f32 0.0, %v1644
      %v1646 = vpop.f32.mrb[0].mxu0
      %v1647 = vpop.f32.mrb[0].mxu0
      %v1648 = vadd.f32 0.0, %v1647
      %v1649 = vpop.f32.mrb[0].mxu0
      %1650 = vmatprep.mubr.bf16.mxu0 %v1190
      %1651 = vmatmul.mubr.bf16.gmra.mrb[0].mxu0 %v893
      %v1652 = vpop.f32.mrb[0].mxu0
      %v1653 = vadd.f32 0.0, %v1652
      %v1654 = vpop.f32.mrb[0].mxu0
      %v1655 = vpop.f32.mrb[0].mxu0
      %v1656 = vadd.f32 0.0, %v1655
      %v1657 = vpop.f32.mrb[0].mxu0
      %1658 = vmatprep.mubr.bf16.mxu0 %v1193
      %1659 = vmatmul.mubr.bf16.gmra.mrb[0].mxu0 %v895
      %v1660 = vpop.f32.mrb[0].mxu0
      %v1661 = vadd.f32 0.0, %v1660
      %v1662 = vpop.f32.mrb[0].mxu0
      %v1663 = vpop.f32.mrb[0].mxu0
      %v1664 = vadd.f32 0.0, %v1663
      %v1665 = vpop.f32.mrb[0].mxu0
      %1666 = vmatprep.mubr.bf16.mxu0 %v1196
      %1667 = vmatmul.mubr.bf16.gmra.mrb[0].mxu0 %v897
      %v1668 = vpop.f32.mrb[0].mxu0
      %v1669 = vadd.f32 0.0, %v1668
      %v1670 = vpop.f32.mrb[0].mxu0
      %v1671 = vpop.f32.mrb[0].mxu0
      %v1672 = vadd.f32 0.0, %v1671
      %v1673 = vpop.f32.mrb[0].mxu0
      %1674 = vmatprep.mubr.bf16.mxu0 %v1199
      %1675 = vmatmul.mubr.bf16.gmra.mrb[0].mxu0 %v899
      %v1676 = vpop.f32.mrb[0].mxu0
      %v1677 = vadd.f32 0.0, %v1676
      %v1678 = vpop.f32.mrb[0].mxu0
      %v1679 = vpop.f32.mrb[0].mxu0
      %v1680 = vadd.f32 0.0, %v1679
      %v1681 = vpop.f32.mrb[0].mxu0
      %1682 = vmatprep.mubr.bf16.mxu0 %v1202
      %1683 = vmatmul.mubr.bf16.gmra.mrb[0].mxu0 %v901
      %v1684 = vpop.f32.mrb[0].mxu0
      %v1685 = vadd.f32 0.0, %v1684
      %v1686 = vpop.f32.mrb[0].mxu0
      %v1687 = vpop.f32.mrb[0].mxu0
      %v1688 = vadd.f32 0.0, %v1687
      %v1689 = vpop.f32.mrb[0].mxu0
      %1690 = vmatprep.mubr.bf16.mxu0 %v1205
      %1691 = vmatmul.mubr.bf16.gmra.mrb[0].mxu0 %v903
      %v1692 = vpop.f32.mrb[0].mxu0
      %v1693 = vadd.f32 0.0, %v1692
      %v1694 = vpop.f32.mrb[0].mxu0
      %v1695 = vpop.f32.mrb[0].mxu0
      %v1696 = vadd.f32 0.0, %v1695
      %v1697 = vpop.f32.mrb[0].mxu0
      %1698 = vmatprep.mubr.bf16.mxu0 %v1208
      %1699 = vmatmul.mubr.bf16.gmra.mrb[0].mxu0 %v905
      %v1700 = vpop.f32.mrb[0].mxu0
      %v1701 = vadd.f32 0.0, %v1700
      %v1702 = vpop.f32.mrb[0].mxu0
      %v1703 = vpop.f32.mrb[0].mxu0
      %v1704 = vadd.f32 0.0, %v1703
      %v1705 = vpop.f32.mrb[0].mxu0
      %1706 = vmatprep.mubr.bf16.mxu0 %v1211
      %1707 = vmatmul.mubr.bf16.gmra.mrb[0].mxu0 %v907
      %v1708 = vpop.f32.mrb[0].mxu0
      %v1709 = vadd.f32 0.0, %v1708
      %v1710 = vpop.f32.mrb[0].mxu0
      %v1711 = vpop.f32.mrb[0].mxu0
      %v1712 = vadd.f32 0.0, %v1711
      %v1713 = vpop.f32.mrb[0].mxu0
      %1714 = vmatprep.mubr.bf16.mxu0 %v1214
      %1715 = vmatmul.mubr.bf16.gmra.mrb[0].mxu0 %v909
      %v1716 = vpop.f32.mrb[0].mxu0
      %v1717 = vadd.f32 0.0, %v1716
      %v1718 = vpop.f32.mrb[0].mxu0
      %v1719 = vpop.f32.mrb[0].mxu0
      %v1720 = vadd.f32 0.0, %v1719
      %v1721 = vpop.f32.mrb[0].mxu0
      %1722 = vmatprep.mubr.bf16.mxu0 %v1217
      %1723 = vmatmul.mubr.bf16.gmra.mrb[0].mxu0 %v911
      %v1724 = vpop.f32.mrb[0].mxu0
      %v1725 = vadd.f32 0.0, %v1724
      %v1726 = vpop.f32.mrb[0].mxu0
      %v1727 = vpop.f32.mrb[0].mxu0
      %v1728 = vadd.f32 0.0, %v1727
      %v1729 = vpop.f32.mrb[0].mxu0
      %1730 = vmatprep.mubr.bf16.mxu0 %v1220
      %1731 = vmatmul.mubr.bf16.gmra.mrb[0].mxu0 %v913
      %v1732 = vpop.f32.mrb[0].mxu0
      %v1733 = vadd.f32 0.0, %v1732
      %v1734 = vpop.f32.mrb[0].mxu0
      %v1735 = vpop.f32.mrb[0].mxu0
      %v1736 = vadd.f32 0.0, %v1735
      %v1737 = vpop.f32.mrb[0].mxu0
      %1738 = vmatprep.mubr.bf16.mxu0 %v1223
      %1739 = vmatmul.mubr.bf16.gmra.mrb[0].mxu0 %v915
      %v1740 = vpop.f32.mrb[0].mxu0
      %v1741 = vadd.f32 0.0, %v1740
      %v1742 = vpop.f32.mrb[0].mxu0
      %v1743 = vpop.f32.mrb[0].mxu0
      %v1744 = vadd.f32 0.0, %v1743
      %v1745 = vpop.f32.mrb[0].mxu0
      %1746 = vmatprep.mubr.bf16.mxu0 %v1226
      %1747 = vmatmul.mubr.bf16.gmra.mrb[0].mxu0 %v917
      %v1748 = vpop.f32.mrb[0].mxu0
      %v1749 = vadd.f32 0.0, %v1748
      %v1750 = vpop.f32.mrb[0].mxu0
      %v1751 = vpop.f32.mrb[0].mxu0
      %v1752 = vadd.f32 0.0, %v1751
      %v1753 = vpop.f32.mrb[0].mxu0
      %1754 = vmatprep.mubr.bf16.mxu0 %v1229
      %1755 = vmatmul.mubr.bf16.gmra.mrb[0].mxu0 %v919
      %v1756 = vpop.f32.mrb[0].mxu0
      %v1757 = vadd.f32 0.0, %v1756
      %v1758 = vpop.f32.mrb[0].mxu0
      %v1759 = vpop.f32.mrb[0].mxu0
      %v1760 = vadd.f32 0.0, %v1759
      %v1761 = vpop.f32.mrb[0].mxu0
      %1762 = vmatprep.mubr.bf16.mxu0 %v1232
      %1763 = vmatmul.mubr.bf16.gmra.mrb[0].mxu0 %v921
      %v1764 = vpop.f32.mrb[0].mxu0
      %v1765 = vadd.f32 0.0, %v1764
      %v1766 = vpop.f32.mrb[0].mxu0
      %v1767 = vpop.f32.mrb[0].mxu0
      %v1768 = vadd.f32 0.0, %v1767
      %v1769 = vpop.f32.mrb[0].mxu0
      %1770 = vmatprep.mubr.bf16.mxu0 %v1235
      %1771 = vmatmul.mubr.bf16.gmra.mrb[0].mxu0 %v923
      %v1772 = vpop.f32.mrb[0].mxu0
      %v1773 = vadd.f32 0.0, %v1772
      %v1774 = vpop.f32.mrb[0].mxu0
      %v1775 = vpop.f32.mrb[0].mxu0
      %v1776 = vadd.f32 0.0, %v1775
      %v1777 = vpop.f32.mrb[0].mxu0
      %1778 = vmatprep.mubr.bf16.mxu0 %v1238
      %1779 = vmatmul.mubr.bf16.gmra.mrb[0].mxu0 %v925
      %v1780 = vpop.f32.mrb[0].mxu0
      %v1781 = vadd.f32 0.0, %v1780
      %v1782 = vpop.f32.mrb[0].mxu0
      %v1783 = vpop.f32.mrb[0].mxu0
      %v1784 = vadd.f32 0.0, %v1783
      %v1785 = vpop.f32.mrb[0].mxu0
      %1786 = vmatprep.mubr.bf16.mxu0 %v1241
      %1787 = vmatmul.mubr.bf16.gmra.mrb[0].mxu0 %v927
      %v1788 = vpop.f32.mrb[0].mxu0
      %v1789 = vadd.f32 0.0, %v1788
      %v1790 = vpop.f32.mrb[0].mxu0
      %v1791 = vpop.f32.mrb[0].mxu0
      %v1792 = vadd.f32 0.0, %v1791
      %v1793 = vpop.f32.mrb[0].mxu0
      %1794 = vdwg.mxu0
      %v1795 = vld [vmem:[%s256] sm:$0x1]
      %v1797 = vlaneseq
      %v1798 = vshrl.u32 %v1797, 7
      %v1799 = vsub.s32 0, %v1798
      %v1800 = vrot.slane %v1795, %v1799
      %v1802 = vmul.f32 %v1285, %v1800
      %v1803 = vmul.f32 %v1288, %v1800
      %v1804 = vmul.f32 %v1293, %v1800
      %v1805 = vmul.f32 %v1296, %v1800
      %v1806 = vmul.f32 %v1301, %v1800
      %v1807 = vmul.f32 %v1304, %v1800
      %v1808 = vmul.f32 %v1309, %v1800
      %v1809 = vmul.f32 %v1312, %v1800
      %v1810 = vmul.f32 %v1317, %v1800
      %v1811 = vmul.f32 %v1320, %v1800
      %v1812 = vmul.f32 %v1325, %v1800
      %v1813 = vmul.f32 %v1328, %v1800
      %v1814 = vmul.f32 %v1333, %v1800
      %v1815 = vmul.f32 %v1336, %v1800
      %v1816 = vmul.f32 %v1341, %v1800
      %v1817 = vmul.f32 %v1344, %v1800
      %v1818 = vmul.f32 %v1349, %v1800
      %v1819 = vmul.f32 %v1352, %v1800
      %v1820 = vmul.f32 %v1357, %v1800
      %v1821 = vmul.f32 %v1360, %v1800
      %v1822 = vmul.f32 %v1365, %v1800
      %v1823 = vmul.f32 %v1368, %v1800
      %v1824 = vmul.f32 %v1373, %v1800
      %v1825 = vmul.f32 %v1376, %v1800
      %v1826 = vmul.f32 %v1381, %v1800
      %v1827 = vmul.f32 %v1384, %v1800
      %v1828 = vmul.f32 %v1389, %v1800
      %v1829 = vmul.f32 %v1392, %v1800
      %v1830 = vmul.f32 %v1397, %v1800
      %v1831 = vmul.f32 %v1400, %v1800
      %v1832 = vmul.f32 %v1405, %v1800
      %v1833 = vmul.f32 %v1408, %v1800
      %v1834 = vmul.f32 %v1413, %v1800
      %v1835 = vmul.f32 %v1416, %v1800
      %v1836 = vmul.f32 %v1421, %v1800
      %v1837 = vmul.f32 %v1424, %v1800
      %v1838 = vmul.f32 %v1429, %v1800
      %v1839 = vmul.f32 %v1432, %v1800
      %v1840 = vmul.f32 %v1437, %v1800
      %v1841 = vmul.f32 %v1440, %v1800
      %v1842 = vmul.f32 %v1445, %v1800
      %v1843 = vmul.f32 %v1448, %v1800
      %v1844 = vmul.f32 %v1453, %v1800
      %v1845 = vmul.f32 %v1456, %v1800
      %v1846 = vmul.f32 %v1461, %v1800
      %v1847 = vmul.f32 %v1464, %v1800
      %v1848 = vmul.f32 %v1469, %v1800
      %v1849 = vmul.f32 %v1472, %v1800
      %v1850 = vmul.f32 %v1477, %v1800
      %v1851 = vmul.f32 %v1480, %v1800
      %v1852 = vmul.f32 %v1485, %v1800
      %v1853 = vmul.f32 %v1488, %v1800
      %v1854 = vmul.f32 %v1493, %v1800
      %v1855 = vmul.f32 %v1496, %v1800
      %v1856 = vmul.f32 %v1501, %v1800
      %v1857 = vmul.f32 %v1504, %v1800
      %v1858 = vmul.f32 %v1509, %v1800
      %v1859 = vmul.f32 %v1512, %v1800
      %v1860 = vmul.f32 %v1517, %v1800
      %v1861 = vmul.f32 %v1520, %v1800
      %v1862 = vmul.f32 %v1525, %v1800
      %v1863 = vmul.f32 %v1528, %v1800
      %v1864 = vmul.f32 %v1533, %v1800
      %v1865 = vmul.f32 %v1536, %v1800
      %v1866 = vmul.f32 %v1541, %v1800
      %v1867 = vmul.f32 %v1544, %v1800
      %v1868 = vmul.f32 %v1549, %v1800
      %v1869 = vmul.f32 %v1552, %v1800
      %v1870 = vmul.f32 %v1557, %v1800
      %v1871 = vmul.f32 %v1560, %v1800
      %v1872 = vmul.f32 %v1565, %v1800
      %v1873 = vmul.f32 %v1568, %v1800
      %v1874 = vmul.f32 %v1573, %v1800
      %v1875 = vmul.f32 %v1576, %v1800
      %v1876 = vmul.f32 %v1581, %v1800
      %v1877 = vmul.f32 %v1584, %v1800
      %v1878 = vmul.f32 %v1589, %v1800
      %v1879 = vmul.f32 %v1592, %v1800
      %v1880 = vmul.f32 %v1597, %v1800
      %v1881 = vmul.f32 %v1600, %v1800
      %v1882 = vmul.f32 %v1605, %v1800
      %v1883 = vmul.f32 %v1608, %v1800
      %v1884 = vmul.f32 %v1613, %v1800
      %v1885 = vmul.f32 %v1616, %v1800
      %v1886 = vmul.f32 %v1621, %v1800
      %v1887 = vmul.f32 %v1624, %v1800
      %v1888 = vmul.f32 %v1629, %v1800
      %v1889 = vmul.f32 %v1632, %v1800
      %v1890 = vmul.f32 %v1637, %v1800
      %v1891 = vmul.f32 %v1640, %v1800
      %v1892 = vmul.f32 %v1645, %v1800
      %v1893 = vmul.f32 %v1648, %v1800
      %v1894 = vmul.f32 %v1653, %v1800
      %v1895 = vmul.f32 %v1656, %v1800
      %v1896 = vmul.f32 %v1661, %v1800
      %v1897 = vmul.f32 %v1664, %v1800
      %v1898 = vmul.f32 %v1669, %v1800
      %v1899 = vmul.f32 %v1672, %v1800
      %v1900 = vmul.f32 %v1677, %v1800
      %v1901 = vmul.f32 %v1680, %v1800
      %v1902 = vmul.f32 %v1685, %v1800
      %v1903 = vmul.f32 %v1688, %v1800
      %v1904 = vmul.f32 %v1693, %v1800
      %v1905 = vmul.f32 %v1696, %v1800
      %v1906 = vmul.f32 %v1701, %v1800
      %v1907 = vmul.f32 %v1704, %v1800
      %v1908 = vmul.f32 %v1709, %v1800
      %v1909 = vmul.f32 %v1712, %v1800
      %v1910 = vmul.f32 %v1717, %v1800
      %v1911 = vmul.f32 %v1720, %v1800
      %v1912 = vmul.f32 %v1725, %v1800
      %v1913 = vmul.f32 %v1728, %v1800
      %v1914 = vmul.f32 %v1733, %v1800
      %v1915 = vmul.f32 %v1736, %v1800
      %v1916 = vmul.f32 %v1741, %v1800
      %v1917 = vmul.f32 %v1744, %v1800
      %v1918 = vmul.f32 %v1749, %v1800
      %v1919 = vmul.f32 %v1752, %v1800
      %v1920 = vmul.f32 %v1757, %v1800
      %v1921 = vmul.f32 %v1760, %v1800
      %v1922 = vmul.f32 %v1765, %v1800
      %v1923 = vmul.f32 %v1768, %v1800
      %v1924 = vmul.f32 %v1773, %v1800
      %v1925 = vmul.f32 %v1776, %v1800
      %v1926 = vmul.f32 %v1781, %v1800
      %v1927 = vmul.f32 %v1784, %v1800
      %v1928 = vmul.f32 %v1789, %v1800
      %v1929 = vmul.f32 %v1792, %v1800
      %v1930 = vld [vmem:[%s259] sm:$0x1]
      %v1932 = vlaneseq
      %v1933 = vshrl.u32 %v1932, 7
      %v1934 = vsub.s32 0, %v1933
      %v1935 = vrot.slane %v1930, %v1934
      %v1937 = vadd.f32 %v1802, %v1935
      %v1938 = vadd.f32 %v1803, %v1935
      %v1939 = vadd.f32 %v1804, %v1935
      %v1940 = vadd.f32 %v1805, %v1935
      %v1941 = vadd.f32 %v1806, %v1935
      %v1942 = vadd.f32 %v1807, %v1935
      %v1943 = vadd.f32 %v1808, %v1935
      %v1944 = vadd.f32 %v1809, %v1935
      %v1945 = vadd.f32 %v1810, %v1935
      %v1946 = vadd.f32 %v1811, %v1935
      %v1947 = vadd.f32 %v1812, %v1935
      %v1948 = vadd.f32 %v1813, %v1935
      %v1949 = vadd.f32 %v1814, %v1935
      %v1950 = vadd.f32 %v1815, %v1935
      %v1951 = vadd.f32 %v1816, %v1935
      %v1952 = vadd.f32 %v1817, %v1935
      %v1953 = vadd.f32 %v1818, %v1935
      %v1954 = vadd.f32 %v1819, %v1935
      %v1955 = vadd.f32 %v1820, %v1935
      %v1956 = vadd.f32 %v1821, %v1935
      %v1957 = vadd.f32 %v1822, %v1935
      %v1958 = vadd.f32 %v1823, %v1935
      %v1959 = vadd.f32 %v1824, %v1935
      %v1960 = vadd.f32 %v1825, %v1935
      %v1961 = vadd.f32 %v1826, %v1935
      %v1962 = vadd.f32 %v1827, %v1935
      %v1963 = vadd.f32 %v1828, %v1935
      %v1964 = vadd.f32 %v1829, %v1935
      %v1965 = vadd.f32 %v1830, %v1935
      %v1966 = vadd.f32 %v1831, %v1935
      %v1967 = vadd.f32 %v1832, %v1935
      %v1968 = vadd.f32 %v1833, %v1935
      %v1969 = vadd.f32 %v1834, %v1935
      %v1970 = vadd.f32 %v1835, %v1935
      %v1971 = vadd.f32 %v1836, %v1935
      %v1972 = vadd.f32 %v1837, %v1935
      %v1973 = vadd.f32 %v1838, %v1935
      %v1974 = vadd.f32 %v1839, %v1935
      %v1975 = vadd.f32 %v1840, %v1935
      %v1976 = vadd.f32 %v1841, %v1935
      %v1977 = vadd.f32 %v1842, %v1935
      %v1978 = vadd.f32 %v1843, %v1935
      %v1979 = vadd.f32 %v1844, %v1935
      %v1980 = vadd.f32 %v1845, %v1935
      %v1981 = vadd.f32 %v1846, %v1935
      %v1982 = vadd.f32 %v1847, %v1935
      %v1983 = vadd.f32 %v1848, %v1935
      %v1984 = vadd.f32 %v1849, %v1935
      %v1985 = vadd.f32 %v1850, %v1935
      %v1986 = vadd.f32 %v1851, %v1935
      %v1987 = vadd.f32 %v1852, %v1935
      %v1988 = vadd.f32 %v1853, %v1935
      %v1989 = vadd.f32 %v1854, %v1935
      %v1990 = vadd.f32 %v1855, %v1935
      %v1991 = vadd.f32 %v1856, %v1935
      %v1992 = vadd.f32 %v1857, %v1935
      %v1993 = vadd.f32 %v1858, %v1935
      %v1994 = vadd.f32 %v1859, %v1935
      %v1995 = vadd.f32 %v1860, %v1935
      %v1996 = vadd.f32 %v1861, %v1935
      %v1997 = vadd.f32 %v1862, %v1935
      %v1998 = vadd.f32 %v1863, %v1935
      %v1999 = vadd.f32 %v1864, %v1935
      %v2000 = vadd.f32 %v1865, %v1935
      %v2001 = vadd.f32 %v1866, %v1935
      %v2002 = vadd.f32 %v1867, %v1935
      %v2003 = vadd.f32 %v1868, %v1935
      %v2004 = vadd.f32 %v1869, %v1935
      %v2005 = vadd.f32 %v1870, %v1935
      %v2006 = vadd.f32 %v1871, %v1935
      %v2007 = vadd.f32 %v1872, %v1935
      %v2008 = vadd.f32 %v1873, %v1935
      %v2009 = vadd.f32 %v1874, %v1935
      %v2010 = vadd.f32 %v1875, %v1935
      %v2011 = vadd.f32 %v1876, %v1935
      %v2012 = vadd.f32 %v1877, %v1935
      %v2013 = vadd.f32 %v1878, %v1935
      %v2014 = vadd.f32 %v1879, %v1935
      %v2015 = vadd.f32 %v1880, %v1935
      %v2016 = vadd.f32 %v1881, %v1935
      %v2017 = vadd.f32 %v1882, %v1935
      %v2018 = vadd.f32 %v1883, %v1935
      %v2019 = vadd.f32 %v1884, %v1935
      %v2020 = vadd.f32 %v1885, %v1935
      %v2021 = vadd.f32 %v1886, %v1935
      %v2022 = vadd.f32 %v1887, %v1935
      %v2023 = vadd.f32 %v1888, %v1935
      %v2024 = vadd.f32 %v1889, %v1935
      %v2025 = vadd.f32 %v1890, %v1935
      %v2026 = vadd.f32 %v1891, %v1935
      %v2027 = vadd.f32 %v1892, %v1935
      %v2028 = vadd.f32 %v1893, %v1935
      %v2029 = vadd.f32 %v1894, %v1935
      %v2030 = vadd.f32 %v1895, %v1935
      %v2031 = vadd.f32 %v1896, %v1935
      %v2032 = vadd.f32 %v1897, %v1935
      %v2033 = vadd.f32 %v1898, %v1935
      %v2034 = vadd.f32 %v1899, %v1935
      %v2035 = vadd.f32 %v1900, %v1935
      %v2036 = vadd.f32 %v1901, %v1935
      %v2037 = vadd.f32 %v1902, %v1935
      %v2038 = vadd.f32 %v1903, %v1935
      %v2039 = vadd.f32 %v1904, %v1935
      %v2040 = vadd.f32 %v1905, %v1935
      %v2041 = vadd.f32 %v1906, %v1935
      %v2042 = vadd.f32 %v1907, %v1935
      %v2043 = vadd.f32 %v1908, %v1935
      %v2044 = vadd.f32 %v1909, %v1935
      %v2045 = vadd.f32 %v1910, %v1935
      %v2046 = vadd.f32 %v1911, %v1935
      %v2047 = vadd.f32 %v1912, %v1935
      %v2048 = vadd.f32 %v1913, %v1935
      %v2049 = vadd.f32 %v1914, %v1935
      %v2050 = vadd.f32 %v1915, %v1935
      %v2051 = vadd.f32 %v1916, %v1935
      %v2052 = vadd.f32 %v1917, %v1935
      %v2053 = vadd.f32 %v1918, %v1935
      %v2054 = vadd.f32 %v1919, %v1935
      %v2055 = vadd.f32 %v1920, %v1935
      %v2056 = vadd.f32 %v1921, %v1935
      %v2057 = vadd.f32 %v1922, %v1935
      %v2058 = vadd.f32 %v1923, %v1935
      %v2059 = vadd.f32 %v1924, %v1935
      %v2060 = vadd.f32 %v1925, %v1935
      %v2061 = vadd.f32 %v1926, %v1935
      %v2062 = vadd.f32 %v1927, %v1935
      %v2063 = vadd.f32 %v1928, %v1935
      %v2064 = vadd.f32 %v1929, %v1935
      %v2065 = vmax.f32 %v1937, 0.0
      %v2066 = vmax.f32 %v1938, 0.0
      %v2067 = vmax.f32 %v1939, 0.0
      %v2068 = vmax.f32 %v1940, 0.0
      %v2069 = vmax.f32 %v1941, 0.0
      %v2070 = vmax.f32 %v1942, 0.0
      %v2071 = vmax.f32 %v1943, 0.0
      %v2072 = vmax.f32 %v1944, 0.0
      %v2073 = vmax.f32 %v1945, 0.0
      %v2074 = vmax.f32 %v1946, 0.0
      %v2075 = vmax.f32 %v1947, 0.0
      %v2076 = vmax.f32 %v1948, 0.0
      %v2077 = vmax.f32 %v1949, 0.0
      %v2078 = vmax.f32 %v1950, 0.0
      %v2079 = vmax.f32 %v1951, 0.0
      %v2080 = vmax.f32 %v1952, 0.0
      %v2081 = vmax.f32 %v1953, 0.0
      %v2082 = vmax.f32 %v1954, 0.0
      %v2083 = vmax.f32 %v1955, 0.0
      %v2084 = vmax.f32 %v1956, 0.0
      %v2085 = vmax.f32 %v1957, 0.0
      %v2086 = vmax.f32 %v1958, 0.0
      %v2087 = vmax.f32 %v1959, 0.0
      %v2088 = vmax.f32 %v1960, 0.0
      %v2089 = vmax.f32 %v1961, 0.0
      %v2090 = vmax.f32 %v1962, 0.0
      %v2091 = vmax.f32 %v1963, 0.0
      %v2092 = vmax.f32 %v1964, 0.0
      %v2093 = vmax.f32 %v1965, 0.0
      %v2094 = vmax.f32 %v1966, 0.0
      %v2095 = vmax.f32 %v1967, 0.0
      %v2096 = vmax.f32 %v1968, 0.0
      %v2097 = vmax.f32 %v1969, 0.0
      %v2098 = vmax.f32 %v1970, 0.0
      %v2099 = vmax.f32 %v1971, 0.0
      %v2100 = vmax.f32 %v1972, 0.0
      %v2101 = vmax.f32 %v1973, 0.0
      %v2102 = vmax.f32 %v1974, 0.0
      %v2103 = vmax.f32 %v1975, 0.0
      %v2104 = vmax.f32 %v1976, 0.0
      %v2105 = vmax.f32 %v1977, 0.0
      %v2106 = vmax.f32 %v1978, 0.0
      %v2107 = vmax.f32 %v1979, 0.0
      %v2108 = vmax.f32 %v1980, 0.0
      %v2109 = vmax.f32 %v1981, 0.0
      %v2110 = vmax.f32 %v1982, 0.0
      %v2111 = vmax.f32 %v1983, 0.0
      %v2112 = vmax.f32 %v1984, 0.0
      %v2113 = vmax.f32 %v1985, 0.0
      %v2114 = vmax.f32 %v1986, 0.0
      %v2115 = vmax.f32 %v1987, 0.0
      %v2116 = vmax.f32 %v1988, 0.0
      %v2117 = vmax.f32 %v1989, 0.0
      %v2118 = vmax.f32 %v1990, 0.0
      %v2119 = vmax.f32 %v1991, 0.0
      %v2120 = vmax.f32 %v1992, 0.0
      %v2121 = vmax.f32 %v1993, 0.0
      %v2122 = vmax.f32 %v1994, 0.0
      %v2123 = vmax.f32 %v1995, 0.0
      %v2124 = vmax.f32 %v1996, 0.0
      %v2125 = vmax.f32 %v1997, 0.0
      %v2126 = vmax.f32 %v1998, 0.0
      %v2127 = vmax.f32 %v1999, 0.0
      %v2128 = vmax.f32 %v2000, 0.0
      %v2129 = vmax.f32 %v2001, 0.0
      %v2130 = vmax.f32 %v2002, 0.0
      %v2131 = vmax.f32 %v2003, 0.0
      %v2132 = vmax.f32 %v2004, 0.0
      %v2133 = vmax.f32 %v2005, 0.0
      %v2134 = vmax.f32 %v2006, 0.0
      %v2135 = vmax.f32 %v2007, 0.0
      %v2136 = vmax.f32 %v2008, 0.0
      %v2137 = vmax.f32 %v2009, 0.0
      %v2138 = vmax.f32 %v2010, 0.0
      %v2139 = vmax.f32 %v2011, 0.0
      %v2140 = vmax.f32 %v2012, 0.0
      %v2141 = vmax.f32 %v2013, 0.0
      %v2142 = vmax.f32 %v2014, 0.0
      %v2143 = vmax.f32 %v2015, 0.0
      %v2144 = vmax.f32 %v2016, 0.0
      %v2145 = vmax.f32 %v2017, 0.0
      %v2146 = vmax.f32 %v2018, 0.0
      %v2147 = vmax.f32 %v2019, 0.0
      %v2148 = vmax.f32 %v2020, 0.0
      %v2149 = vmax.f32 %v2021, 0.0
      %v2150 = vmax.f32 %v2022, 0.0
      %v2151 = vmax.f32 %v2023, 0.0
      %v2152 = vmax.f32 %v2024, 0.0
      %v2153 = vmax.f32 %v2025, 0.0
      %v2154 = vmax.f32 %v2026, 0.0
      %v2155 = vmax.f32 %v2027, 0.0
      %v2156 = vmax.f32 %v2028, 0.0
      %v2157 = vmax.f32 %v2029, 0.0
      %v2158 = vmax.f32 %v2030, 0.0
      %v2159 = vmax.f32 %v2031, 0.0
      %v2160 = vmax.f32 %v2032, 0.0
      %v2161 = vmax.f32 %v2033, 0.0
      %v2162 = vmax.f32 %v2034, 0.0
      %v2163 = vmax.f32 %v2035, 0.0
      %v2164 = vmax.f32 %v2036, 0.0
      %v2165 = vmax.f32 %v2037, 0.0
      %v2166 = vmax.f32 %v2038, 0.0
      %v2167 = vmax.f32 %v2039, 0.0
      %v2168 = vmax.f32 %v2040, 0.0
      %v2169 = vmax.f32 %v2041, 0.0
      %v2170 = vmax.f32 %v2042, 0.0
      %v2171 = vmax.f32 %v2043, 0.0
      %v2172 = vmax.f32 %v2044, 0.0
      %v2173 = vmax.f32 %v2045, 0.0
      %v2174 = vmax.f32 %v2046, 0.0
      %v2175 = vmax.f32 %v2047, 0.0
      %v2176 = vmax.f32 %v2048, 0.0
      %v2177 = vmax.f32 %v2049, 0.0
      %v2178 = vmax.f32 %v2050, 0.0
      %v2179 = vmax.f32 %v2051, 0.0
      %v2180 = vmax.f32 %v2052, 0.0
      %v2181 = vmax.f32 %v2053, 0.0
      %v2182 = vmax.f32 %v2054, 0.0
      %v2183 = vmax.f32 %v2055, 0.0
      %v2184 = vmax.f32 %v2056, 0.0
      %v2185 = vmax.f32 %v2057, 0.0
      %v2186 = vmax.f32 %v2058, 0.0
      %v2187 = vmax.f32 %v2059, 0.0
      %v2188 = vmax.f32 %v2060, 0.0
      %v2189 = vmax.f32 %v2061, 0.0
      %v2190 = vmax.f32 %v2062, 0.0
      %v2191 = vmax.f32 %v2063, 0.0
      %v2192 = vmax.f32 %v2064, 0.0
      %v2193 = vpack.c.bf16 %v2066, %v2065
      %v2194 = vpack.c.bf16 %v2068, %v2067
      %v2195 = vpack.c.bf16 %v2070, %v2069
      %v2196 = vpack.c.bf16 %v2072, %v2071
      %v2197 = vpack.c.bf16 %v2074, %v2073
      %v2198 = vpack.c.bf16 %v2076, %v2075
      %v2199 = vpack.c.bf16 %v2078, %v2077
      %v2200 = vpack.c.bf16 %v2080, %v2079
      %v2201 = vpack.c.bf16 %v2082, %v2081
      %v2202 = vpack.c.bf16 %v2084, %v2083
      %v2203 = vpack.c.bf16 %v2086, %v2085
      %v2204 = vpack.c.bf16 %v2088, %v2087
      %v2205 = vpack.c.bf16 %v2090, %v2089
      %v2206 = vpack.c.bf16 %v2092, %v2091
      %v2207 = vpack.c.bf16 %v2094, %v2093
      %v2208 = vpack.c.bf16 %v2096, %v2095
      %v2209 = vpack.c.bf16 %v2098, %v2097
      %v2210 = vpack.c.bf16 %v2100, %v2099
      %v2211 = vpack.c.bf16 %v2102, %v2101
      %v2212 = vpack.c.bf16 %v2104, %v2103
      %v2213 = vpack.c.bf16 %v2106, %v2105
      %v2214 = vpack.c.bf16 %v2108, %v2107
      %v2215 = vpack.c.bf16 %v2110, %v2109
      %v2216 = vpack.c.bf16 %v2112, %v2111
      %v2217 = vpack.c.bf16 %v2114, %v2113
      %v2218 = vpack.c.bf16 %v2116, %v2115
      %v2219 = vpack.c.bf16 %v2118, %v2117
      %v2220 = vpack.c.bf16 %v2120, %v2119
      %v2221 = vpack.c.bf16 %v2122, %v2121
      %v2222 = vpack.c.bf16 %v2124, %v2123
      %v2223 = vpack.c.bf16 %v2126, %v2125
      %v2224 = vpack.c.bf16 %v2128, %v2127
      %v2225 = vpack.c.bf16 %v2130, %v2129
      %v2226 = vpack.c.bf16 %v2132, %v2131
      %v2227 = vpack.c.bf16 %v2134, %v2133
      %v2228 = vpack.c.bf16 %v2136, %v2135
      %v2229 = vpack.c.bf16 %v2138, %v2137
      %v2230 = vpack.c.bf16 %v2140, %v2139
      %v2231 = vpack.c.bf16 %v2142, %v2141
      %v2232 = vpack.c.bf16 %v2144, %v2143
      %v2233 = vpack.c.bf16 %v2146, %v2145
      %v2234 = vpack.c.bf16 %v2148, %v2147
      %v2235 = vpack.c.bf16 %v2150, %v2149
      %v2236 = vpack.c.bf16 %v2152, %v2151
      %v2237 = vpack.c.bf16 %v2154, %v2153
      %v2238 = vpack.c.bf16 %v2156, %v2155
      %v2239 = vpack.c.bf16 %v2158, %v2157
      %v2240 = vpack.c.bf16 %v2160, %v2159
      %v2241 = vpack.c.bf16 %v2162, %v2161
      %v2242 = vpack.c.bf16 %v2164, %v2163
      %v2243 = vpack.c.bf16 %v2166, %v2165
      %v2244 = vpack.c.bf16 %v2168, %v2167
      %v2245 = vpack.c.bf16 %v2170, %v2169
      %v2246 = vpack.c.bf16 %v2172, %v2171
      %v2247 = vpack.c.bf16 %v2174, %v2173
      %v2248 = vpack.c.bf16 %v2176, %v2175
      %v2249 = vpack.c.bf16 %v2178, %v2177
      %v2250 = vpack.c.bf16 %v2180, %v2179
      %v2251 = vpack.c.bf16 %v2182, %v2181
      %v2252 = vpack.c.bf16 %v2184, %v2183
      %v2253 = vpack.c.bf16 %v2186, %v2185
      %v2254 = vpack.c.bf16 %v2188, %v2187
      %v2255 = vpack.c.bf16 %v2190, %v2189
      %v2256 = vpack.c.bf16 %v2192, %v2191
      %v2321 = vunpack.c.l.b16 %v2193
      %v2322 = vunpack.c.h.b16 %v2193
      %v2323 = vunpack.c.l.b16 %v2194
      %v2324 = vunpack.c.h.b16 %v2194
      %v2325 = vunpack.c.l.b16 %v2195
      %v2326 = vunpack.c.h.b16 %v2195
      %v2327 = vunpack.c.l.b16 %v2196
      %v2328 = vunpack.c.h.b16 %v2196
      %v2329 = vunpack.c.l.b16 %v2197
      %v2330 = vunpack.c.h.b16 %v2197
      %v2331 = vunpack.c.l.b16 %v2198
      %v2332 = vunpack.c.h.b16 %v2198
      %v2333 = vunpack.c.l.b16 %v2199
      %v2334 = vunpack.c.h.b16 %v2199
      %v2335 = vunpack.c.l.b16 %v2200
      %v2336 = vunpack.c.h.b16 %v2200
      %v2337 = vunpack.c.l.b16 %v2201
      %v2338 = vunpack.c.h.b16 %v2201
      %v2339 = vunpack.c.l.b16 %v2202
      %v2340 = vunpack.c.h.b16 %v2202
      %v2341 = vunpack.c.l.b16 %v2203
      %v2342 = vunpack.c.h.b16 %v2203
      %v2343 = vunpack.c.l.b16 %v2204
      %v2344 = vunpack.c.h.b16 %v2204
      %v2345 = vunpack.c.l.b16 %v2205
      %v2346 = vunpack.c.h.b16 %v2205
      %v2347 = vunpack.c.l.b16 %v2206
      %v2348 = vunpack.c.h.b16 %v2206
      %v2349 = vunpack.c.l.b16 %v2207
      %v2350 = vunpack.c.h.b16 %v2207
      %v2351 = vunpack.c.l.b16 %v2208
      %v2352 = vunpack.c.h.b16 %v2208
      %v2353 = vunpack.c.l.b16 %v2209
      %v2354 = vunpack.c.h.b16 %v2209
      %v2355 = vunpack.c.l.b16 %v2210
      %v2356 = vunpack.c.h.b16 %v2210
      %v2357 = vunpack.c.l.b16 %v2211
      %v2358 = vunpack.c.h.b16 %v2211
      %v2359 = vunpack.c.l.b16 %v2212
      %v2360 = vunpack.c.h.b16 %v2212
      %v2361 = vunpack.c.l.b16 %v2213
      %v2362 = vunpack.c.h.b16 %v2213
      %v2363 = vunpack.c.l.b16 %v2214
      %v2364 = vunpack.c.h.b16 %v2214
      %v2365 = vunpack.c.l.b16 %v2215
      %v2366 = vunpack.c.h.b16 %v2215
      %v2367 = vunpack.c.l.b16 %v2216
      %v2368 = vunpack.c.h.b16 %v2216
      %v2369 = vunpack.c.l.b16 %v2217
      %v2370 = vunpack.c.h.b16 %v2217
      %v2371 = vunpack.c.l.b16 %v2218
      %v2372 = vunpack.c.h.b16 %v2218
      %v2373 = vunpack.c.l.b16 %v2219
      %v2374 = vunpack.c.h.b16 %v2219
      %v2375 = vunpack.c.l.b16 %v2220
      %v2376 = vunpack.c.h.b16 %v2220
      %v2377 = vunpack.c.l.b16 %v2221
      %v2378 = vunpack.c.h.b16 %v2221
      %v2379 = vunpack.c.l.b16 %v2222
      %v2380 = vunpack.c.h.b16 %v2222
      %v2381 = vunpack.c.l.b16 %v2223
      %v2382 = vunpack.c.h.b16 %v2223
      %v2383 = vunpack.c.l.b16 %v2224
      %v2384 = vunpack.c.h.b16 %v2224
      %v2385 = vunpack.c.l.b16 %v2225
      %v2386 = vunpack.c.h.b16 %v2225
      %v2387 = vunpack.c.l.b16 %v2226
      %v2388 = vunpack.c.h.b16 %v2226
      %v2389 = vunpack.c.l.b16 %v2227
      %v2390 = vunpack.c.h.b16 %v2227
      %v2391 = vunpack.c.l.b16 %v2228
      %v2392 = vunpack.c.h.b16 %v2228
      %v2393 = vunpack.c.l.b16 %v2229
      %v2394 = vunpack.c.h.b16 %v2229
      %v2395 = vunpack.c.l.b16 %v2230
      %v2396 = vunpack.c.h.b16 %v2230
      %v2397 = vunpack.c.l.b16 %v2231
      %v2398 = vunpack.c.h.b16 %v2231
      %v2399 = vunpack.c.l.b16 %v2232
      %v2400 = vunpack.c.h.b16 %v2232
      %v2401 = vunpack.c.l.b16 %v2233
      %v2402 = vunpack.c.h.b16 %v2233
      %v2403 = vunpack.c.l.b16 %v2234
      %v2404 = vunpack.c.h.b16 %v2234
      %v2405 = vunpack.c.l.b16 %v2235
      %v2406 = vunpack.c.h.b16 %v2235
      %v2407 = vunpack.c.l.b16 %v2236
      %v2408 = vunpack.c.h.b16 %v2236
      %v2409 = vunpack.c.l.b16 %v2237
      %v2410 = vunpack.c.h.b16 %v2237
      %v2411 = vunpack.c.l.b16 %v2238
      %v2412 = vunpack.c.h.b16 %v2238
      %v2413 = vunpack.c.l.b16 %v2239
      %v2414 = vunpack.c.h.b16 %v2239
      %v2415 = vunpack.c.l.b16 %v2240
      %v2416 = vunpack.c.h.b16 %v2240
      %v2417 = vunpack.c.l.b16 %v2241
      %v2418 = vunpack.c.h.b16 %v2241
      %v2419 = vunpack.c.l.b16 %v2242
      %v2420 = vunpack.c.h.b16 %v2242
      %v2421 = vunpack.c.l.b16 %v2243
      %v2422 = vunpack.c.h.b16 %v2243
      %v2423 = vunpack.c.l.b16 %v2244
      %v2424 = vunpack.c.h.b16 %v2244
      %v2425 = vunpack.c.l.b16 %v2245
      %v2426 = vunpack.c.h.b16 %v2245
      %v2427 = vunpack.c.l.b16 %v2246
      %v2428 = vunpack.c.h.b16 %v2246
      %v2429 = vunpack.c.l.b16 %v2247
      %v2430 = vunpack.c.h.b16 %v2247
      %v2431 = vunpack.c.l.b16 %v2248
      %v2432 = vunpack.c.h.b16 %v2248
      %v2433 = vunpack.c.l.b16 %v2249
      %v2434 = vunpack.c.h.b16 %v2249
      %v2435 = vunpack.c.l.b16 %v2250
      %v2436 = vunpack.c.h.b16 %v2250
      %v2437 = vunpack.c.l.b16 %v2251
      %v2438 = vunpack.c.h.b16 %v2251
      %v2439 = vunpack.c.l.b16 %v2252
      %v2440 = vunpack.c.h.b16 %v2252
      %v2441 = vunpack.c.l.b16 %v2253
      %v2442 = vunpack.c.h.b16 %v2253
      %v2443 = vunpack.c.l.b16 %v2254
      %v2444 = vunpack.c.h.b16 %v2254
      %v2445 = vunpack.c.l.b16 %v2255
      %v2446 = vunpack.c.h.b16 %v2255
      %v2447 = vunpack.c.l.b16 %v2256
      %v2448 = vunpack.c.h.b16 %v2256
      %v2449 = vpack.c.b16 %v2321, %v2321
      %v2450 = vpack.c.b16 %v2322, %v2322
      %v2451 = vpack.c.b16 %v2323, %v2323
      %v2452 = vpack.c.b16 %v2324, %v2324
      %v2453 = vpack.c.b16 %v2325, %v2325
      %v2454 = vpack.c.b16 %v2326, %v2326
      %v2455 = vpack.c.b16 %v2327, %v2327
      %v2456 = vpack.c.b16 %v2328, %v2328
      %v2457 = vpack.c.b16 %v2329, %v2329
      %v2458 = vpack.c.b16 %v2330, %v2330
      %v2459 = vpack.c.b16 %v2331, %v2331
      %v2460 = vpack.c.b16 %v2332, %v2332
      %v2461 = vpack.c.b16 %v2333, %v2333
      %v2462 = vpack.c.b16 %v2334, %v2334
      %v2463 = vpack.c.b16 %v2335, %v2335
      %v2464 = vpack.c.b16 %v2336, %v2336
      %v2465 = vpack.c.b16 %v2337, %v2337
      %v2466 = vpack.c.b16 %v2338, %v2338
      %v2467 = vpack.c.b16 %v2339, %v2339
      %v2468 = vpack.c.b16 %v2340, %v2340
      %v2469 = vpack.c.b16 %v2341, %v2341
      %v2470 = vpack.c.b16 %v2342, %v2342
      %v2471 = vpack.c.b16 %v2343, %v2343
      %v2472 = vpack.c.b16 %v2344, %v2344
      %v2473 = vpack.c.b16 %v2345, %v2345
      %v2474 = vpack.c.b16 %v2346, %v2346
      %v2475 = vpack.c.b16 %v2347, %v2347
      %v2476 = vpack.c.b16 %v2348, %v2348
      %v2477 = vpack.c.b16 %v2349, %v2349
      %v2478 = vpack.c.b16 %v2350, %v2350
      %v2479 = vpack.c.b16 %v2351, %v2351
      %v2480 = vpack.c.b16 %v2352, %v2352
      %v2481 = vpack.c.b16 %v2353, %v2353
      %v2482 = vpack.c.b16 %v2354, %v2354
      %v2483 = vpack.c.b16 %v2355, %v2355
      %v2484 = vpack.c.b16 %v2356, %v2356
      %v2485 = vpack.c.b16 %v2357, %v2357
      %v2486 = vpack.c.b16 %v2358, %v2358
      %v2487 = vpack.c.b16 %v2359, %v2359
      %v2488 = vpack.c.b16 %v2360, %v2360
      %v2489 = vpack.c.b16 %v2361, %v2361
      %v2490 = vpack.c.b16 %v2362, %v2362
      %v2491 = vpack.c.b16 %v2363, %v2363
      %v2492 = vpack.c.b16 %v2364, %v2364
      %v2493 = vpack.c.b16 %v2365, %v2365
      %v2494 = vpack.c.b16 %v2366, %v2366
      %v2495 = vpack.c.b16 %v2367, %v2367
      %v2496 = vpack.c.b16 %v2368, %v2368
      %v2497 = vpack.c.b16 %v2369, %v2369
      %v2498 = vpack.c.b16 %v2370, %v2370
      %v2499 = vpack.c.b16 %v2371, %v2371
      %v2500 = vpack.c.b16 %v2372, %v2372
      %v2501 = vpack.c.b16 %v2373, %v2373
      %v2502 = vpack.c.b16 %v2374, %v2374
      %v2503 = vpack.c.b16 %v2375, %v2375
      %v2504 = vpack.c.b16 %v2376, %v2376
      %v2505 = vpack.c.b16 %v2377, %v2377
      %v2506 = vpack.c.b16 %v2378, %v2378
      %v2507 = vpack.c.b16 %v2379, %v2379
      %v2508 = vpack.c.b16 %v2380, %v2380
      %v2509 = vpack.c.b16 %v2381, %v2381
      %v2510 = vpack.c.b16 %v2382, %v2382
      %v2511 = vpack.c.b16 %v2383, %v2383
      %v2512 = vpack.c.b16 %v2384, %v2384
      %v2513 = vpack.c.b16 %v2385, %v2385
      %v2514 = vpack.c.b16 %v2386, %v2386
      %v2515 = vpack.c.b16 %v2387, %v2387
      %v2516 = vpack.c.b16 %v2388, %v2388
      %v2517 = vpack.c.b16 %v2389, %v2389
      %v2518 = vpack.c.b16 %v2390, %v2390
      %v2519 = vpack.c.b16 %v2391, %v2391
      %v2520 = vpack.c.b16 %v2392, %v2392
      %v2521 = vpack.c.b16 %v2393, %v2393
      %v2522 = vpack.c.b16 %v2394, %v2394
      %v2523 = vpack.c.b16 %v2395, %v2395
      %v2524 = vpack.c.b16 %v2396, %v2396
      %v2525 = vpack.c.b16 %v2397, %v2397
      %v2526 = vpack.c.b16 %v2398, %v2398
      %v2527 = vpack.c.b16 %v2399, %v2399
      %v2528 = vpack.c.b16 %v2400, %v2400
      %v2529 = vpack.c.b16 %v2401, %v2401
      %v2530 = vpack.c.b16 %v2402, %v2402
      %v2531 = vpack.c.b16 %v2403, %v2403
      %v2532 = vpack.c.b16 %v2404, %v2404
      %v2533 = vpack.c.b16 %v2405, %v2405
      %v2534 = vpack.c.b16 %v2406, %v2406
      %v2535 = vpack.c.b16 %v2407, %v2407
      %v2536 = vpack.c.b16 %v2408, %v2408
      %v2537 = vpack.c.b16 %v2409, %v2409
      %v2538 = vpack.c.b16 %v2410, %v2410
      %v2539 = vpack.c.b16 %v2411, %v2411
      %v2540 = vpack.c.b16 %v2412, %v2412
      %v2541 = vpack.c.b16 %v2413, %v2413
      %v2542 = vpack.c.b16 %v2414, %v2414
      %v2543 = vpack.c.b16 %v2415, %v2415
      %v2544 = vpack.c.b16 %v2416, %v2416
      %v2545 = vpack.c.b16 %v2417, %v2417
      %v2546 = vpack.c.b16 %v2418, %v2418
      %v2547 = vpack.c.b16 %v2419, %v2419
      %v2548 = vpack.c.b16 %v2420, %v2420
      %v2549 = vpack.c.b16 %v2421, %v2421
      %v2550 = vpack.c.b16 %v2422, %v2422
      %v2551 = vpack.c.b16 %v2423, %v2423
      %v2552 = vpack.c.b16 %v2424, %v2424
      %v2553 = vpack.c.b16 %v2425, %v2425
      %v2554 = vpack.c.b16 %v2426, %v2426
      %v2555 = vpack.c.b16 %v2427, %v2427
      %v2556 = vpack.c.b16 %v2428, %v2428
      %v2557 = vpack.c.b16 %v2429, %v2429
      %v2558 = vpack.c.b16 %v2430, %v2430
      %v2559 = vpack.c.b16 %v2431, %v2431
      %v2560 = vpack.c.b16 %v2432, %v2432
      %v2561 = vpack.c.b16 %v2433, %v2433
      %v2562 = vpack.c.b16 %v2434, %v2434
      %v2563 = vpack.c.b16 %v2435, %v2435
      %v2564 = vpack.c.b16 %v2436, %v2436
      %v2565 = vpack.c.b16 %v2437, %v2437
      %v2566 = vpack.c.b16 %v2438, %v2438
      %v2567 = vpack.c.b16 %v2439, %v2439
      %v2568 = vpack.c.b16 %v2440, %v2440
      %v2569 = vpack.c.b16 %v2441, %v2441
      %v2570 = vpack.c.b16 %v2442, %v2442
      %v2571 = vpack.c.b16 %v2443, %v2443
      %v2572 = vpack.c.b16 %v2444, %v2444
      %v2573 = vpack.c.b16 %v2445, %v2445
      %v2574 = vpack.c.b16 %v2446, %v2446
      %v2575 = vpack.c.b16 %v2447, %v2447
      %v2576 = vpack.c.b16 %v2448, %v2448
      %2705 = vst [vmem:[%s267] sm:$0xf] %v2449
      %2706 = vst [vmem:[%s267 + $0x4] sm:$0xf] %v2450
      %2707 = vst [vmem:[%s267 + $0x8] sm:$0xf] %v2451
      %2708 = vst [vmem:[%s267 + $0xc] sm:$0xf] %v2452
      %2709 = vst [vmem:[%s267 + $0x10] sm:$0xf] %v2453
      %2710 = vst [vmem:[%s267 + $0x14] sm:$0xf] %v2454
      %2711 = vst [vmem:[%s267 + $0x18] sm:$0xf] %v2455
      %2712 = vst [vmem:[%s267 + $0x1c] sm:$0xf] %v2456
      %2713 = vst [vmem:[%s267 + $0x20] sm:$0xf] %v2457
      %2714 = vst [vmem:[%s267 + $0x24] sm:$0xf] %v2458
      %2715 = vst [vmem:[%s267 + $0x28] sm:$0xf] %v2459
      %2716 = vst [vmem:[%s267 + $0x2c] sm:$0xf] %v2460
      %2717 = vst [vmem:[%s267 + $0x30] sm:$0xf] %v2461
      %2718 = vst [vmem:[%s267 + $0x34] sm:$0xf] %v2462
      %2719 = vst [vmem:[%s267 + $0x38] sm:$0xf] %v2463
      %2720 = vst [vmem:[%s267 + $0x3c] sm:$0xf] %v2464
      %2721 = vst [vmem:[%s267 + $0x40] sm:$0xf] %v2465
      %2722 = vst [vmem:[%s267 + $0x44] sm:$0xf] %v2466
      %2723 = vst [vmem:[%s267 + $0x48] sm:$0xf] %v2467
      %2724 = vst [vmem:[%s267 + $0x4c] sm:$0xf] %v2468
      %2725 = vst [vmem:[%s267 + $0x50] sm:$0xf] %v2469
      %2726 = vst [vmem:[%s267 + $0x54] sm:$0xf] %v2470
      %2727 = vst [vmem:[%s267 + $0x58] sm:$0xf] %v2471
      %2728 = vst [vmem:[%s267 + $0x5c] sm:$0xf] %v2472
      %2729 = vst [vmem:[%s267 + $0x60] sm:$0xf] %v2473
      %2730 = vst [vmem:[%s267 + $0x64] sm:$0xf] %v2474
      %2731 = vst [vmem:[%s267 + $0x68] sm:$0xf] %v2475
      %2732 = vst [vmem:[%s267 + $0x6c] sm:$0xf] %v2476
      %2733 = vst [vmem:[%s267 + $0x70] sm:$0xf] %v2477
      %2734 = vst [vmem:[%s267 + $0x74] sm:$0xf] %v2478
      %2735 = vst [vmem:[%s267 + $0x78] sm:$0xf] %v2479
      %2736 = vst [vmem:[%s267 + $0x7c] sm:$0xf] %v2480
      %2737 = vst [vmem:[%s267 + $0x80] sm:$0xf] %v2481
      %2738 = vst [vmem:[%s267 + $0x84] sm:$0xf] %v2482
      %2739 = vst [vmem:[%s267 + $0x88] sm:$0xf] %v2483
      %2740 = vst [vmem:[%s267 + $0x8c] sm:$0xf] %v2484
      %2741 = vst [vmem:[%s267 + $0x90] sm:$0xf] %v2485
      %2742 = vst [vmem:[%s267 + $0x94] sm:$0xf] %v2486
      %2743 = vst [vmem:[%s267 + $0x98] sm:$0xf] %v2487
      %2744 = vst [vmem:[%s267 + $0x9c] sm:$0xf] %v2488
      %2745 = vst [vmem:[%s267 + $0xa0] sm:$0xf] %v2489
      %2746 = vst [vmem:[%s267 + $0xa4] sm:$0xf] %v2490
      %2747 = vst [vmem:[%s267 + $0xa8] sm:$0xf] %v2491
      %2748 = vst [vmem:[%s267 + $0xac] sm:$0xf] %v2492
      %2749 = vst [vmem:[%s267 + $0xb0] sm:$0xf] %v2493
      %2750 = vst [vmem:[%s267 + $0xb4] sm:$0xf] %v2494
      %2751 = vst [vmem:[%s267 + $0xb8] sm:$0xf] %v2495
      %2752 = vst [vmem:[%s267 + $0xbc] sm:$0xf] %v2496
      %2753 = vst [vmem:[%s267 + $0xc0] sm:$0xf] %v2497
      %2754 = vst [vmem:[%s267 + $0xc4] sm:$0xf] %v2498
      %2755 = vst [vmem:[%s267 + $0xc8] sm:$0xf] %v2499
      %2756 = vst [vmem:[%s267 + $0xcc] sm:$0xf] %v2500
      %2757 = vst [vmem:[%s267 + $0xd0] sm:$0xf] %v2501
      %2758 = vst [vmem:[%s267 + $0xd4] sm:$0xf] %v2502
      %2759 = vst [vmem:[%s267 + $0xd8] sm:$0xf] %v2503
      %2760 = vst [vmem:[%s267 + $0xdc] sm:$0xf] %v2504
      %2761 = vst [vmem:[%s267 + $0xe0] sm:$0xf] %v2505
      %2762 = vst [vmem:[%s267 + $0xe4] sm:$0xf] %v2506
      %2763 = vst [vmem:[%s267 + $0xe8] sm:$0xf] %v2507
      %2764 = vst [vmem:[%s267 + $0xec] sm:$0xf] %v2508
      %2765 = vst [vmem:[%s267 + $0xf0] sm:$0xf] %v2509
      %2766 = vst [vmem:[%s267 + $0xf4] sm:$0xf] %v2510
      %2767 = vst [vmem:[%s267 + $0xf8] sm:$0xf] %v2511
      %2768 = vst [vmem:[%s267 + $0xfc] sm:$0xf] %v2512
      %2769 = vst [vmem:[%s267 + $0x100] sm:$0xf] %v2513
      %2770 = vst [vmem:[%s267 + $0x104] sm:$0xf] %v2514
      %2771 = vst [vmem:[%s267 + $0x108] sm:$0xf] %v2515
      %2772 = vst [vmem:[%s267 + $0x10c] sm:$0xf] %v2516
      %2773 = vst [vmem:[%s267 + $0x110] sm:$0xf] %v2517
      %2774 = vst [vmem:[%s267 + $0x114] sm:$0xf] %v2518
      %2775 = vst [vmem:[%s267 + $0x118] sm:$0xf] %v2519
      %2776 = vst [vmem:[%s267 + $0x11c] sm:$0xf] %v2520
      %2777 = vst [vmem:[%s267 + $0x120] sm:$0xf] %v2521
      %2778 = vst [vmem:[%s267 + $0x124] sm:$0xf] %v2522
      %2779 = vst [vmem:[%s267 + $0x128] sm:$0xf] %v2523
      %2780 = vst [vmem:[%s267 + $0x12c] sm:$0xf] %v2524
      %2781 = vst [vmem:[%s267 + $0x130] sm:$0xf] %v2525
      %2782 = vst [vmem:[%s267 + $0x134] sm:$0xf] %v2526
      %2783 = vst [vmem:[%s267 + $0x138] sm:$0xf] %v2527
      %2784 = vst [vmem:[%s267 + $0x13c] sm:$0xf] %v2528
      %2785 = vst [vmem:[%s267 + $0x140] sm:$0xf] %v2529
      %2786 = vst [vmem:[%s267 + $0x144] sm:$0xf] %v2530
      %2787 = vst [vmem:[%s267 + $0x148] sm:$0xf] %v2531
      %2788 = vst [vmem:[%s267 + $0x14c] sm:$0xf] %v2532
      %2789 = vst [vmem:[%s267 + $0x150] sm:$0xf] %v2533
      %2790 = vst [vmem:[%s267 + $0x154] sm:$0xf] %v2534
      %2791 = vst [vmem:[%s267 + $0x158] sm:$0xf] %v2535
      %2792 = vst [vmem:[%s267 + $0x15c] sm:$0xf] %v2536
      %2793 = vst [vmem:[%s267 + $0x160] sm:$0xf] %v2537
      %2794 = vst [vmem:[%s267 + $0x164] sm:$0xf] %v2538
      %2795 = vst [vmem:[%s267 + $0x168] sm:$0xf] %v2539
      %2796 = vst [vmem:[%s267 + $0x16c] sm:$0xf] %v2540
      %2797 = vst [vmem:[%s267 + $0x170] sm:$0xf] %v2541
      %2798 = vst [vmem:[%s267 + $0x174] sm:$0xf] %v2542
      %2799 = vst [vmem:[%s267 + $0x178] sm:$0xf] %v2543
      %2800 = vst [vmem:[%s267 + $0x17c] sm:$0xf] %v2544
      %2801 = vst [vmem:[%s267 + $0x180] sm:$0xf] %v2545
      %2802 = vst [vmem:[%s267 + $0x184] sm:$0xf] %v2546
      %2803 = vst [vmem:[%s267 + $0x188] sm:$0xf] %v2547
      %2804 = vst [vmem:[%s267 + $0x18c] sm:$0xf] %v2548
      %2805 = vst [vmem:[%s267 + $0x190] sm:$0xf] %v2549
      %2806 = vst [vmem:[%s267 + $0x194] sm:$0xf] %v2550
      %2807 = vst [vmem:[%s267 + $0x198] sm:$0xf] %v2551
      %2808 = vst [vmem:[%s267 + $0x19c] sm:$0xf] %v2552
      %2809 = vst [vmem:[%s267 + $0x1a0] sm:$0xf] %v2553
      %2810 = vst [vmem:[%s267 + $0x1a4] sm:$0xf] %v2554
      %2811 = vst [vmem:[%s267 + $0x1a8] sm:$0xf] %v2555
      %2812 = vst [vmem:[%s267 + $0x1ac] sm:$0xf] %v2556
      %2813 = vst [vmem:[%s267 + $0x1b0] sm:$0xf] %v2557
      %2814 = vst [vmem:[%s267 + $0x1b4] sm:$0xf] %v2558
      %2815 = vst [vmem:[%s267 + $0x1b8] sm:$0xf] %v2559
      %2816 = vst [vmem:[%s267 + $0x1bc] sm:$0xf] %v2560
      %2817 = vst [vmem:[%s267 + $0x1c0] sm:$0xf] %v2561
      %2818 = vst [vmem:[%s267 + $0x1c4] sm:$0xf] %v2562
      %2819 = vst [vmem:[%s267 + $0x1c8] sm:$0xf] %v2563
      %2820 = vst [vmem:[%s267 + $0x1cc] sm:$0xf] %v2564
      %2821 = vst [vmem:[%s267 + $0x1d0] sm:$0xf] %v2565
      %2822 = vst [vmem:[%s267 + $0x1d4] sm:$0xf] %v2566
      %2823 = vst [vmem:[%s267 + $0x1d8] sm:$0xf] %v2567
      %2824 = vst [vmem:[%s267 + $0x1dc] sm:$0xf] %v2568
      %2825 = vst [vmem:[%s267 + $0x1e0] sm:$0xf] %v2569
      %2826 = vst [vmem:[%s267 + $0x1e4] sm:$0xf] %v2570
      %2827 = vst [vmem:[%s267 + $0x1e8] sm:$0xf] %v2571
      %2828 = vst [vmem:[%s267 + $0x1ec] sm:$0xf] %v2572
      %2829 = vst [vmem:[%s267 + $0x1f0] sm:$0xf] %v2573
      %2830 = vst [vmem:[%s267 + $0x1f4] sm:$0xf] %v2574
      %2831 = vst [vmem:[%s267 + $0x1f8] sm:$0xf] %v2575
      %2832 = vst [vmem:[%s267 + $0x1fc] sm:$0xf] %v2576
      %s2833 = smul.u32 128, %s19
      %p2834 = scmp.lt.s32.totalorder %s2833, 255
      %s2835 = scalar_select %p2834, %s2833, 255
      %p2836 = scmp.lt.s32.totalorder %s20, 0
      %s2837 = scalar_select %p2836, %s20, 0
      %s2838 = sadd.s32 %s2837, %s2835
      %s2839 = smul.addr %s2838, 4
      %s2840 = scalar_lea.vmem %s4, %s2839
      // Predicated region
      $region37: #{fused_matmul.1} parent=35 // pred_check
        %p2841 = pneg %p151
      $region38: #{fused_matmul.1} parent=35 // pred_check_branch
        %2843 = sbr.rel (%p2841) target = $region40
      $region39: #{fused_matmul.1} parent=35 // pred_region
        %s2844 = smul.u32 128, %s19
      $region40: #{fused_matmul.1} parent=35 // pred_fallthru
        _
    $region36: #{fused_matmul.1} parent=5 // pred_fallthru
      _
    %p2845 = scmp.le.s32.totalorder 2, %s10
    // Predicated region
    $region41: #{fused_matmul.1} parent=5 // pred_check
      %p2846 = pneg %p2845
    $region42: #{fused_matmul.1} parent=5 // pred_check_branch
      %2848 = sbr.rel (%p2846) target = $region44
    $region43: #{fused_matmul.1} parent=5 // pred_region
      %s2849 = ssub.s32 %s10, 2
      // Predicated region
      $region45: #{fused_matmul.1} parent=43 // pred_check
        %p2850 = pneg %p157
      $region46: #{fused_matmul.1} parent=43 // pred_check_branch
        %2852 = sbr.rel (%p2850) target = $region48
      $region47: #{fused_matmul.1} parent=43 // pred_region
        %s2853 = smul.u32 128, %s21
        %p2854 = scmp.lt.s32.totalorder %s2853, 255
        %s2855 = scalar_select %p2854, %s2853, 255
        %p2856 = scmp.lt.s32.totalorder %s22, 0
        %s2857 = scalar_select %p2856, %s22, 0
        %s2858 = sadd.s32 %s2857, %s2855
        %s2859 = smul.addr %s2858, 4
        %s2860 = scalar_lea.vmem %s4, %s2859
      $region48: #{fused_matmul.1} parent=43 // pred_fallthru
        _
    $region44: #{fused_matmul.1} parent=5 // pred_fallthru
      _
  $region6: #{fused_matmul.1} parent=0 // loop_footer
    %s14 = sadd.s32 1, %s10
  $region7: #{fused_matmul.1} parent=0 // loop_footer_branch
    %9 = sbr.rel target = $region3
  $region8: #{fused_matmul.1} parent=0 // loop_exit
    _

</llo_original>
